<compile_context>
chip_gen: v5e
topology: v5e:2x2
jax: 0.10.0
libtpu: 0.0.40
codegen_flags: <defaults>
</compile_context>

<pallas_src>
import jax
import jax.numpy as jnp
from jax.experimental import pallas as pl
from jax.experimental.pallas import tpu as pltpu

# ----------------------------- model dims ----------------------------------
B = 2                       # batch
T = 8                       # frames per video (sequence length)
C, H, W = 4, 16, 16
F = C * H * W               # flattened frame dim = 1024
D = 128                     # vidt.output_dim (hidden size)
HM = 256                    # MLP hidden
L = 8                       # num_topic_labels
LP = 128                    # lane-padded classifier width
LN_EPS = 1e-5

# column offsets inside the packed (D, WN) weight slab [Wq|Wk|Wv|Wo|W1|Wc_pad]
_QKV0, _QKV1 = 0, 3 * D               # 0   .. 384
_WO0, _WO1 = 3 * D, 4 * D             # 384 .. 512
_W10, _W11 = 4 * D, 4 * D + HM        # 512 .. 768
_WC0, _WC1 = 4 * D + HM, 4 * D + HM + LP   # 768 .. 896
WN = _WC1                              # 896

NV = 10                               # rows in the packed bias/LN vector slab
VW = 3 * D                            # 384 = widest vector (b_qkv)


# ----------------------------- Pallas kernel -------------------------------
def _vidt_cls_kernel(frames_ref,     # (Bb, T, F)   bf16
                     w_emb_ref,      # (F, D)       bf16
                     wn_ref,         # (D, WN)      f32  packed [Wq|Wk|Wv|Wo|W1|Wc]
                     w2_ref,         # (HM, D)      f32
                     vec_ref,        # (NV, VW)     f32  packed biases / LN vectors
                     embs_ref,       # (Bb, T, D)   f32
                     avg_ref,        # (Bb, 1, D)   f32
                     logits_ref):    # (Bb, 1, LP)  f32
    bb, t, f = frames_ref.shape
    r = bb * t

    # Packed small vectors (each field starts on a 128-lane boundary).
    b_emb = vec_ref[0:1, 0:D]
    g1 = vec_ref[1:2, 0:D]
    be1 = vec_ref[2:3, 0:D]
    b_qkv = vec_ref[3:4, 0:3 * D]
    bo = vec_ref[4:5, 0:D]
    g2 = vec_ref[5:6, 0:D]
    be2 = vec_ref[6:7, 0:D]
    b1 = vec_ref[7:8, 0:HM]
    b2 = vec_ref[8:9, 0:D]
    bc = vec_ref[9:10, 0:LP]

    # ---- frame embedding: (Bb*T, F) @ (F, D), bf16 operands, f32 accumulation
    x = frames_ref[...].reshape(r, f)
    h = jnp.dot(x, w_emb_ref[...], preferred_element_type=jnp.float32) + b_emb

    def layer_norm(z, g, b):
        mu = jnp.mean(z, axis=-1, keepdims=True)
        var = jnp.mean((z - mu) ** 2, axis=-1, keepdims=True)
        return (z - mu) * jax.lax.rsqrt(var + LN_EPS) * g + b

    # ---- self-attention block (pre-LN, single head), fused QKV matmul
    hn = layer_norm(h, g1, be1)
    qkv = jnp.dot(hn, wn_ref[:, _QKV0:_QKV1],
                  preferred_element_type=jnp.float32) + b_qkv          # (R, 3D)
    q = qkv[:, 0:D].reshape(bb, t, D)
    k = qkv[:, D:2 * D].reshape(bb, t, D)
    v = qkv[:, 2 * D:3 * D].reshape(bb, t, D)

    # per-sample attention: contraction on the last dim (no materialized k.T)
    scores = jnp.einsum("btd,bsd->bts", q, k,
                        preferred_element_type=jnp.float32) * (1.0 / (D ** 0.5))
    scores = scores - jnp.max(scores, axis=-1, keepdims=True)
    p = jnp.exp(scores)
    attn = p / jnp.sum(p, axis=-1, keepdims=True)
    attn_out = jnp.einsum("bts,bsd->btd", attn, v,
                          preferred_element_type=jnp.float32).reshape(r, D)
    h = h + jnp.dot(attn_out, wn_ref[:, _WO0:_WO1],
                    preferred_element_type=jnp.float32) + bo

    # ---- MLP block (pre-LN)
    hn2 = layer_norm(h, g2, be2)
    m = jnp.dot(hn2, wn_ref[:, _W10:_W11],
                preferred_element_type=jnp.float32) + b1
    m = jax.nn.gelu(m)
    m = jnp.dot(m, w2_ref[...], preferred_element_type=jnp.float32) + b2
    h = h + m                                                          # (R, D)

    h3 = h.reshape(bb, t, D)
    embs_ref[...] = h3.astype(embs_ref.dtype)

    # mean pool over time
    avg = jnp.mean(h3, axis=1)                                         # (Bb, D)
    # TODO(synk): nn.Dropout(p=0.2) — identity in eval mode; training-mode
    # stochastic dropout (pltpu.prng_random_bits mask) not applied here.
    avg_ref[...] = avg.reshape(bb, 1, D).astype(avg_ref.dtype)

    # classifier (lane-padded to 128 columns; padding columns are exactly zero)
    logits = jnp.dot(avg, wn_ref[:, _WC0:_WC1],
                     preferred_element_type=jnp.float32) + bc          # (Bb, LP)
    logits_ref[...] = logits.reshape(bb, 1, LP).astype(logits_ref.dtype)


# ----------------------------- wrapper --------------------------------------
def _pick_batch_block(b, t):
    # Cap rows per grid step at 128 (MXU-friendly M = Bb*T) while using as few
    # grid steps as possible (each grid step costs ~0.35us fixed overhead).
    max_bb = max(1, 128 // t)
    bb = min(b, max_bb)
    while b % bb:                      # need a divisor of b
        bb -= 1
    return bb


def _const_spec(shape):
    n = len(shape)
    return pl.BlockSpec(shape, lambda i, _n=n: (0,) * _n)


def _pack_params(p):
    """Pack the 20 small parameter tensors into 4 DMA-friendly slabs."""
    wc_pad = jnp.zeros((D, LP), jnp.float32).at[:, :L].set(p["wc"])
    wn = jnp.concatenate(
        [p["wq"], p["wk"], p["wv"], p["wo"], p["w1"], wc_pad], axis=1)   # (D, WN)

    def row(v):
        v = v.reshape(1, -1).astype(jnp.float32)
        return jnp.zeros((1, VW), jnp.float32).at[:, :v.shape[1]].set(v)

    b_qkv = jnp.concatenate([p["bq"], p["bk"], p["bv"]], axis=1)         # (1, 3D)
    vec = jnp.concatenate(
        [row(p["b_emb"]), row(p["g1"]), row(p["be1"]), row(b_qkv),
         row(p["bo"]), row(p["g2"]), row(p["be2"]), row(p["b1"]),
         row(p["b2"]), row(p["bc"])], axis=0)                            # (NV, VW)

    return p["w_emb"].astype(jnp.bfloat16), wn, p["w2"], vec


@jax.jit
def video_transformer_classifier(frames, params):
    """frames: (B, T, C, H, W) f32 → (logits (B,L), avg_pooled (B,D), embs (B,T,D))."""
    b, t, c, h, w = frames.shape
    f = c * h * w
    x = frames.reshape(b, t, f).astype(jnp.bfloat16)

    w_emb, wn, w2, vec = _pack_params(params)

    bb = _pick_batch_block(b, t)
    nb = b // bb
    # NOTE(v7x): with 2 TensorCores, prefer >=2 'parallel' grid steps when b
    # allows (bb <= b // 2); at this toy size a single fused step wins anyway.

    out_shape = (
        jax.ShapeDtypeStruct((b, t, D), jnp.float32),    # video_embs
        jax.ShapeDtypeStruct((b, 1, D), jnp.float32),    # avg_pooled
        jax.ShapeDtypeStruct((b, 1, LP), jnp.float32),   # logits (lane-padded)
    )
    embs, avg, logits = pl.pallas_call(
        _vidt_cls_kernel,
        out_shape=out_shape,
        grid_spec=pltpu.PrefetchScalarGridSpec(
            num_scalar_prefetch=0,
            grid=(nb,),
            in_specs=[
                pl.BlockSpec((bb, t, f), lambda i: (i, 0, 0)),
                _const_spec((f, D)),
                _const_spec((D, WN)),
                _const_spec((HM, D)),
                _const_spec((NV, VW)),
            ],
            out_specs=(
                pl.BlockSpec((bb, t, D), lambda i: (i, 0, 0)),
                pl.BlockSpec((bb, 1, D), lambda i: (i, 0, 0)),
                pl.BlockSpec((bb, 1, LP), lambda i: (i, 0, 0)),
            ),
        ),
        compiler_params=pltpu.CompilerParams(
            dimension_semantics=("parallel",)),
    )(x, w_emb, wn, w2, vec)

    return logits[:, 0, :L], avg[:, 0, :], embs


def cross_entropy_loss(logits, labels):
    # Glue (not hot path): nn.CrossEntropyLoss semantics (mean reduction).
    logz = jax.nn.logsumexp(logits, axis=-1)
    nll = logz - jnp.take_along_axis(logits, labels[:, None], axis=-1)[:, 0]
    return jnp.mean(nll)


# ----------------------------- reference (pure JAX) -------------------------
def _reference(frames, p):
    b, t = frames.shape[:2]
    x = frames.reshape(b, t, -1)
    # match the kernel's bf16 embedding matmul (f32 accumulation)
    h = jnp.dot(x.astype(jnp.bfloat16), p["w_emb"].astype(jnp.bfloat16),
                preferred_element_type=jnp.float32) + p["b_emb"]

    def ln(z, g, bias):
        mu = jnp.mean(z, -1, keepdims=True)
        var = jnp.mean((z - mu) ** 2, -1, keepdims=True)
        return (z - mu) * jax.lax.rsqrt(var + LN_EPS) * g + bias

    hn = ln(h, p["g1"], p["be1"])
    q = hn @ p["wq"] + p["bq"]
    k = hn @ p["wk"] + p["bk"]
    v = hn @ p["wv"] + p["bv"]
    s = jnp.einsum("btd,bsd->bts", q, k) / (D ** 0.5)
    a = jax.nn.softmax(s, axis=-1)
    h = h + jnp.einsum("bts,bsd->btd", a, v) @ p["wo"] + p["bo"]
    hn2 = ln(h, p["g2"], p["be2"])
    m = jax.nn.gelu(hn2 @ p["w1"] + p["b1"]) @ p["w2"] + p["b2"]
    h = h + m
    avg = jnp.mean(h, axis=1)
    logits = avg @ p["wc"] + p["bc"]
    return logits, avg, h


# ----------------------------- param init -----------------------------------
def init_params(key):
    ks = jax.random.split(key, 16)

    def lin(k, shape, fan_in):
        return jax.random.normal(k, shape, jnp.float32) / (fan_in ** 0.5)

    return {
        "w_emb": lin(ks[0], (F, D), F), "b_emb": jnp.zeros((1, D), jnp.float32),
        "g1": jnp.ones((1, D), jnp.float32), "be1": jnp.zeros((1, D), jnp.float32),
        "wq": lin(ks[1], (D, D), D), "bq": jnp.zeros((1, D), jnp.float32),
        "wk": lin(ks[2], (D, D), D), "bk": jnp.zeros((1, D), jnp.float32),
        "wv": lin(ks[3], (D, D), D), "bv": jnp.zeros((1, D), jnp.float32),
        "wo": lin(ks[4], (D, D), D), "bo": jnp.zeros((1, D), jnp.float32),
        "g2": jnp.ones((1, D), jnp.float32), "be2": jnp.zeros((1, D), jnp.float32),
        "w1": lin(ks[5], (D, HM), D), "b1": jnp.zeros((1, HM), jnp.float32),
        "w2": lin(ks[6], (HM, D), HM), "b2": jnp.zeros((1, D), jnp.float32),
        "wc": lin(ks[7], (D, L), D), "bc": jnp.zeros((1, L), jnp.float32),
    }


# ----------------------------- main ------------------------------------------
if __name__ == "__main__":
    key = jax.random.PRNGKey(0)
    k_x, k_p, k_lbl = jax.random.split(key, 3)

    frames = jax.random.normal(k_x, (B, T, C, H, W), jnp.float32)
    params = init_params(k_p)
    labels = jax.random.randint(k_lbl, (B,), 0, L)

    logits, avg_pooled, video_embs = video_transformer_classifier(frames, params)
    jax.block_until_ready((logits, avg_pooled, video_embs))

    # optional: CE loss path (labels provided)
    loss = cross_entropy_loss(logits, labels)
    jax.block_until_ready(loss)

    # correctness check against pure-JAX reference
    ref_logits, ref_avg, ref_embs = _reference(frames, params)
    assert jnp.allclose(logits, ref_logits, atol=5e-3, rtol=5e-3)
    assert jnp.allclose(avg_pooled, ref_avg, atol=5e-3, rtol=5e-3)
    assert jnp.allclose(video_embs, ref_embs, atol=5e-3, rtol=5e-3)

    print("KERNEL_OK")
</pallas_src>

<mosaic_0001>
module attributes {stable_mosaic.version = 11 : i64} {
  func.func @_vidt_cls_kernel(%arg0: i32, %arg1: memref<2x8x1024xbf16, #tpu.memory_space<vmem>>, %arg2: memref<1024x128xbf16, #tpu.memory_space<vmem>>, %arg3: memref<128x896xf32, #tpu.memory_space<vmem>>, %arg4: memref<256x128xf32, #tpu.memory_space<vmem>>, %arg5: memref<10x384xf32, #tpu.memory_space<vmem>>, %arg6: memref<2x8x128xf32, #tpu.memory_space<vmem>>, %arg7: memref<2x1x128xf32, #tpu.memory_space<vmem>>, %arg8: memref<2x1x128xf32, #tpu.memory_space<vmem>>) attributes {dimension_semantics = [#tpu.dimension_semantics<parallel>], iteration_bounds = array<i64: 1>, scalar_prefetch = 0 : i64, scratch_operands = 0 : i64, tpu.core_type = #tpu.core_type<tc>, window_params = [{transform_indices = @transform_0, window_bounds = array<i64: 2, 8, 1024>}, {pipeline_mode = #tpu.pipeline_mode<synchronous>, transform_indices = @transform_1, window_bounds = array<i64: 1024, 128>}, {pipeline_mode = #tpu.pipeline_mode<synchronous>, transform_indices = @transform_2, window_bounds = array<i64: 128, 896>}, {pipeline_mode = #tpu.pipeline_mode<synchronous>, transform_indices = @transform_3, window_bounds = array<i64: 256, 128>}, {pipeline_mode = #tpu.pipeline_mode<synchronous>, transform_indices = @transform_4, window_bounds = array<i64: 10, 384>}, {transform_indices = @transform_5, window_bounds = array<i64: 2, 8, 128>}, {transform_indices = @transform_6, window_bounds = array<i64: 2, 1, 128>}, {transform_indices = @transform_7, window_bounds = array<i64: 2, 1, 128>}]} {
    %c0 = arith.constant 0 : index
    %c0_0 = arith.constant 0 : index
    %0 = vector.load %arg5[%c0, %c0_0] : memref<10x384xf32, #tpu.memory_space<vmem>>, vector<1x128xf32>
    %c1 = arith.constant 1 : index
    %c0_1 = arith.constant 0 : index
    %1 = vector.load %arg5[%c1, %c0_1] : memref<10x384xf32, #tpu.memory_space<vmem>>, vector<1x128xf32>
    %c2 = arith.constant 2 : index
    %c0_2 = arith.constant 0 : index
    %2 = vector.load %arg5[%c2, %c0_2] : memref<10x384xf32, #tpu.memory_space<vmem>>, vector<1x128xf32>
    %c3 = arith.constant 3 : index
    %c0_3 = arith.constant 0 : index
    %3 = vector.load %arg5[%c3, %c0_3] : memref<10x384xf32, #tpu.memory_space<vmem>>, vector<1x384xf32>
    %c4 = arith.constant 4 : index
    %c0_4 = arith.constant 0 : index
    %4 = vector.load %arg5[%c4, %c0_4] : memref<10x384xf32, #tpu.memory_space<vmem>>, vector<1x128xf32>
    %c5 = arith.constant 5 : index
    %c0_5 = arith.constant 0 : index
    %5 = vector.load %arg5[%c5, %c0_5] : memref<10x384xf32, #tpu.memory_space<vmem>>, vector<1x128xf32>
    %c6 = arith.constant 6 : index
    %c0_6 = arith.constant 0 : index
    %6 = vector.load %arg5[%c6, %c0_6] : memref<10x384xf32, #tpu.memory_space<vmem>>, vector<1x128xf32>
    %c7 = arith.constant 7 : index
    %c0_7 = arith.constant 0 : index
    %7 = vector.load %arg5[%c7, %c0_7] : memref<10x384xf32, #tpu.memory_space<vmem>>, vector<1x256xf32>
    %c8 = arith.constant 8 : index
    %c0_8 = arith.constant 0 : index
    %8 = vector.load %arg5[%c8, %c0_8] : memref<10x384xf32, #tpu.memory_space<vmem>>, vector<1x128xf32>
    %c9 = arith.constant 9 : index
    %c0_9 = arith.constant 0 : index
    %9 = vector.load %arg5[%c9, %c0_9] : memref<10x384xf32, #tpu.memory_space<vmem>>, vector<1x128xf32>
    %c0_10 = arith.constant 0 : index
    %c0_11 = arith.constant 0 : index
    %c0_12 = arith.constant 0 : index
    %10 = vector.load %arg1[%c0_10, %c0_11, %c0_12] : memref<2x8x1024xbf16, #tpu.memory_space<vmem>>, vector<2x8x1024xbf16>
    %11 = vector.shape_cast %10 : vector<2x8x1024xbf16> to vector<16x1024xbf16>
    %c0_13 = arith.constant 0 : index
    %c0_14 = arith.constant 0 : index
    %12 = vector.load %arg2[%c0_13, %c0_14] : memref<1024x128xbf16, #tpu.memory_space<vmem>>, vector<1024x128xbf16>
    %cst = arith.constant dense<0.000000e+00> : vector<16x128xf32>
    %13 = tpu.matmul %11, %12, %cst {dimension_numbers = #tpu.dot_dimension_numbers<[1], [0], [0], [1], [0, 0, 1, 1], [], []>} : vector<16x1024xbf16>, vector<1024x128xbf16>, vector<16x128xf32> -> vector<16x128xf32>
    %14 = vector.broadcast %0 : vector<1x128xf32> to vector<16x128xf32>
    %15 = arith.addf %13, %14 : vector<16x128xf32>
    %cst_15 = arith.constant dense<0.000000e+00> : vector<16xf32>
    %16 = vector.multi_reduction <add>, %15, %cst_15 [1] : vector<16x128xf32> to vector<16xf32>
    %17 = vector.shape_cast %16 : vector<16xf32> to vector<16x1xf32>
    %cst_16 = arith.constant 1.280000e+02 : f32
    %18 = vector.broadcast %cst_16 : f32 to vector<16x1xf32>
    %19 = arith.divf %17, %18 : vector<16x1xf32>
    %20 = vector.broadcast %19 : vector<16x1xf32> to vector<16x128xf32>
    %21 = arith.subf %15, %20 : vector<16x128xf32>
    %22 = arith.mulf %21, %21 : vector<16x128xf32>
    %cst_17 = arith.constant dense<0.000000e+00> : vector<16xf32>
    %23 = vector.multi_reduction <add>, %22, %cst_17 [1] : vector<16x128xf32> to vector<16xf32>
    %24 = vector.shape_cast %23 : vector<16xf32> to vector<16x1xf32>
    %cst_18 = arith.constant 1.280000e+02 : f32
    %25 = vector.broadcast %cst_18 : f32 to vector<16x1xf32>
    %26 = arith.divf %24, %25 : vector<16x1xf32>
    %27 = vector.broadcast %19 : vector<16x1xf32> to vector<16x128xf32>
    %28 = arith.subf %15, %27 : vector<16x128xf32>
    %cst_19 = arith.constant 9.99999974E-6 : f32
    %29 = vector.broadcast %cst_19 : f32 to vector<16x1xf32>
    %30 = arith.addf %26, %29 : vector<16x1xf32>
    %31 = math.rsqrt %30 : vector<16x1xf32>
    %32 = vector.broadcast %31 : vector<16x1xf32> to vector<16x128xf32>
    %33 = arith.mulf %28, %32 : vector<16x128xf32>
    %34 = vector.broadcast %1 : vector<1x128xf32> to vector<16x128xf32>
    %35 = arith.mulf %33, %34 : vector<16x128xf32>
    %36 = vector.broadcast %2 : vector<1x128xf32> to vector<16x128xf32>
    %37 = arith.addf %35, %36 : vector<16x128xf32>
    %c0_20 = arith.constant 0 : index
    %c0_21 = arith.constant 0 : index
    %38 = vector.load %arg3[%c0_20, %c0_21] : memref<128x896xf32, #tpu.memory_space<vmem>>, vector<128x384xf32>
    %cst_22 = arith.constant dense<0.000000e+00> : vector<16x384xf32>
    %39 = tpu.matmul %37, %38, %cst_22 {dimension_numbers = #tpu.dot_dimension_numbers<[1], [0], [0], [1], [0, 0, 1, 1], [], []>} : vector<16x128xf32>, vector<128x384xf32>, vector<16x384xf32> -> vector<16x384xf32>
    %40 = vector.broadcast %3 : vector<1x384xf32> to vector<16x384xf32>
    %41 = arith.addf %39, %40 : vector<16x384xf32>
    %42 = vector.extract_strided_slice %41 {offsets = [0, 0], sizes = [16, 128], strides = [1, 1]} : vector<16x384xf32> to vector<16x128xf32>
    %43 = vector.shape_cast %42 : vector<16x128xf32> to vector<2x8x128xf32>
    %44 = vector.extract_strided_slice %41 {offsets = [0, 128], sizes = [16, 128], strides = [1, 1]} : vector<16x384xf32> to vector<16x128xf32>
    %45 = vector.shape_cast %44 : vector<16x128xf32> to vector<2x8x128xf32>
    %46 = vector.extract_strided_slice %41 {offsets = [0, 256], sizes = [16, 128], strides = [1, 1]} : vector<16x384xf32> to vector<16x128xf32>
    %47 = vector.shape_cast %46 : vector<16x128xf32> to vector<2x8x128xf32>
    "tpu.trace_start"() <{level = 10 : i32, message = "btd,bsd->bts"}> : () -> ()
    %cst_23 = arith.constant dense<0.000000e+00> : vector<2x8x8xf32>
    %48 = tpu.matmul %43, %45, %cst_23 {dimension_numbers = #tpu.dot_dimension_numbers<[2], [2], [1], [1], [0, 0, 0, 1, 1, 1], [0], [0]>} : vector<2x8x128xf32>, vector<2x8x128xf32>, vector<2x8x8xf32> -> vector<2x8x8xf32>
    "tpu.trace_stop"() : () -> ()
    %cst_24 = arith.constant 0.0883883461 : f32
    %49 = vector.broadcast %cst_24 : f32 to vector<2x8x8xf32>
    %50 = arith.mulf %48, %49 : vector<2x8x8xf32>
    %cst_25 = arith.constant dense<0xFF800000> : vector<2x8xf32>
    %51 = vector.multi_reduction <maximumf>, %50, %cst_25 [2] : vector<2x8x8xf32> to vector<2x8xf32>
    %52 = vector.shape_cast %51 : vector<2x8xf32> to vector<2x8x1xf32>
    %53 = vector.broadcast %52 : vector<2x8x1xf32> to vector<2x8x8xf32>
    %54 = arith.subf %50, %53 : vector<2x8x8xf32>
    %55 = math.exp %54 : vector<2x8x8xf32>
    %cst_26 = arith.constant dense<0.000000e+00> : vector<2x8xf32>
    %56 = vector.multi_reduction <add>, %55, %cst_26 [2] : vector<2x8x8xf32> to vector<2x8xf32>
    %57 = vector.shape_cast %56 : vector<2x8xf32> to vector<2x8x1xf32>
    %58 = vector.broadcast %57 : vector<2x8x1xf32> to vector<2x8x8xf32>
    %59 = arith.divf %55, %58 : vector<2x8x8xf32>
    "tpu.trace_start"() <{level = 10 : i32, message = "bts,bsd->btd"}> : () -> ()
    %cst_27 = arith.constant dense<0.000000e+00> : vector<2x8x128xf32>
    %60 = tpu.matmul %59, %47, %cst_27 {dimension_numbers = #tpu.dot_dimension_numbers<[2], [1], [1], [2], [0, 0, 0, 1, 1, 2], [0], [0]>} : vector<2x8x8xf32>, vector<2x8x128xf32>, vector<2x8x128xf32> -> vector<2x8x128xf32>
    "tpu.trace_stop"() : () -> ()
    %61 = vector.shape_cast %60 : vector<2x8x128xf32> to vector<16x128xf32>
    %c0_28 = arith.constant 0 : index
    %c384 = arith.constant 384 : index
    %62 = vector.load %arg3[%c0_28, %c384] : memref<128x896xf32, #tpu.memory_space<vmem>>, vector<128x128xf32>
    %cst_29 = arith.constant dense<0.000000e+00> : vector<16x128xf32>
    %63 = tpu.matmul %61, %62, %cst_29 {dimension_numbers = #tpu.dot_dimension_numbers<[1], [0], [0], [1], [0, 0, 1, 1], [], []>} : vector<16x128xf32>, vector<128x128xf32>, vector<16x128xf32> -> vector<16x128xf32>
    %64 = arith.addf %15, %63 : vector<16x128xf32>
    %65 = vector.broadcast %4 : vector<1x128xf32> to vector<16x128xf32>
    %66 = arith.addf %64, %65 : vector<16x128xf32>
    %cst_30 = arith.constant dense<0.000000e+00> : vector<16xf32>
    %67 = vector.multi_reduction <add>, %66, %cst_30 [1] : vector<16x128xf32> to vector<16xf32>
    %68 = vector.shape_cast %67 : vector<16xf32> to vector<16x1xf32>
    %cst_31 = arith.constant 1.280000e+02 : f32
    %69 = vector.broadcast %cst_31 : f32 to vector<16x1xf32>
    %70 = arith.divf %68, %69 : vector<16x1xf32>
    %71 = vector.broadcast %70 : vector<16x1xf32> to vector<16x128xf32>
    %72 = arith.subf %66, %71 : vector<16x128xf32>
    %73 = arith.mulf %72, %72 : vector<16x128xf32>
    %cst_32 = arith.constant dense<0.000000e+00> : vector<16xf32>
    %74 = vector.multi_reduction <add>, %73, %cst_32 [1] : vector<16x128xf32> to vector<16xf32>
    %75 = vector.shape_cast %74 : vector<16xf32> to vector<16x1xf32>
    %cst_33 = arith.constant 1.280000e+02 : f32
    %76 = vector.broadcast %cst_33 : f32 to vector<16x1xf32>
    %77 = arith.divf %75, %76 : vector<16x1xf32>
    %78 = vector.broadcast %70 : vector<16x1xf32> to vector<16x128xf32>
    %79 = arith.subf %66, %78 : vector<16x128xf32>
    %cst_34 = arith.constant 9.99999974E-6 : f32
    %80 = vector.broadcast %cst_34 : f32 to vector<16x1xf32>
    %81 = arith.addf %77, %80 : vector<16x1xf32>
    %82 = math.rsqrt %81 : vector<16x1xf32>
    %83 = vector.broadcast %82 : vector<16x1xf32> to vector<16x128xf32>
    %84 = arith.mulf %79, %83 : vector<16x128xf32>
    %85 = vector.broadcast %5 : vector<1x128xf32> to vector<16x128xf32>
    %86 = arith.mulf %84, %85 : vector<16x128xf32>
    %87 = vector.broadcast %6 : vector<1x128xf32> to vector<16x128xf32>
    %88 = arith.addf %86, %87 : vector<16x128xf32>
    %c0_35 = arith.constant 0 : index
    %c512 = arith.constant 512 : index
    %89 = vector.load %arg3[%c0_35, %c512] : memref<128x896xf32, #tpu.memory_space<vmem>>, vector<128x256xf32>
    %cst_36 = arith.constant dense<0.000000e+00> : vector<16x256xf32>
    %90 = tpu.matmul %88, %89, %cst_36 {dimension_numbers = #tpu.dot_dimension_numbers<[1], [0], [0], [1], [0, 0, 1, 1], [], []>} : vector<16x128xf32>, vector<128x256xf32>, vector<16x256xf32> -> vector<16x256xf32>
    %91 = vector.broadcast %7 : vector<1x256xf32> to vector<16x256xf32>
    %92 = arith.addf %90, %91 : vector<16x256xf32>
    %93 = arith.mulf %92, %92 : vector<16x256xf32>
    %94 = arith.mulf %92, %93 : vector<16x256xf32>
    %cst_37 = arith.constant 4.471500e-02 : f32
    %95 = vector.broadcast %cst_37 : f32 to vector<16x256xf32>
    %96 = arith.mulf %95, %94 : vector<16x256xf32>
    %97 = arith.addf %92, %96 : vector<16x256xf32>
    %cst_38 = arith.constant 0.797884583 : f32
    %98 = vector.broadcast %cst_38 : f32 to vector<16x256xf32>
    %99 = arith.mulf %98, %97 : vector<16x256xf32>
    %100 = math.tanh %99 : vector<16x256xf32>
    %cst_39 = arith.constant 1.000000e+00 : f32
    %101 = vector.broadcast %cst_39 : f32 to vector<16x256xf32>
    %102 = arith.addf %101, %100 : vector<16x256xf32>
    %cst_40 = arith.constant 5.000000e-01 : f32
    %103 = vector.broadcast %cst_40 : f32 to vector<16x256xf32>
    %104 = arith.mulf %103, %102 : vector<16x256xf32>
    %105 = arith.mulf %92, %104 : vector<16x256xf32>
    %c0_41 = arith.constant 0 : index
    %c0_42 = arith.constant 0 : index
    %106 = vector.load %arg4[%c0_41, %c0_42] : memref<256x128xf32, #tpu.memory_space<vmem>>, vector<256x128xf32>
    %cst_43 = arith.constant dense<0.000000e+00> : vector<16x128xf32>
    %107 = tpu.matmul %105, %106, %cst_43 {dimension_numbers = #tpu.dot_dimension_numbers<[1], [0], [0], [1], [0, 0, 1, 1], [], []>} : vector<16x256xf32>, vector<256x128xf32>, vector<16x128xf32> -> vector<16x128xf32>
    %108 = vector.broadcast %8 : vector<1x128xf32> to vector<16x128xf32>
    %109 = arith.addf %107, %108 : vector<16x128xf32>
    %110 = arith.addf %66, %109 : vector<16x128xf32>
    %111 = vector.shape_cast %110 : vector<16x128xf32> to vector<2x8x128xf32>
    %c0_44 = arith.constant 0 : index
    %c0_45 = arith.constant 0 : index
    %c0_46 = arith.constant 0 : index
    %112 = vector.load %arg6[%c0_44, %c0_45, %c0_46] : memref<2x8x128xf32, #tpu.memory_space<vmem>>, vector<2x8x128xf32>
    tpu.vector_store %arg6[%c0_44, %c0_45, %c0_46], %111 {strides = array<i32>} : memref<2x8x128xf32, #tpu.memory_space<vmem>>, vector<2x8x128xf32>,
    %cst_47 = arith.constant dense<0.000000e+00> : vector<2x128xf32>
    %113 = vector.multi_reduction <add>, %111, %cst_47 [1] : vector<2x8x128xf32> to vector<2x128xf32>
    %cst_48 = arith.constant 8.000000e+00 : f32
    %114 = vector.broadcast %cst_48 : f32 to vector<2x128xf32>
    %115 = arith.divf %113, %114 : vector<2x128xf32>
    %116 = vector.shape_cast %115 : vector<2x128xf32> to vector<2x1x128xf32>
    %c0_49 = arith.constant 0 : index
    %c0_50 = arith.constant 0 : index
    %c0_51 = arith.constant 0 : index
    %117 = vector.load %arg7[%c0_49, %c0_50, %c0_51] : memref<2x1x128xf32, #tpu.memory_space<vmem>>, vector<2x1x128xf32>
    tpu.vector_store %arg7[%c0_49, %c0_50, %c0_51], %116 {strides = array<i32>} : memref<2x1x128xf32, #tpu.memory_space<vmem>>, vector<2x1x128xf32>,
    %c0_52 = arith.constant 0 : index
    %c768 = arith.constant 768 : index
    %118 = vector.load %arg3[%c0_52, %c768] : memref<128x896xf32, #tpu.memory_space<vmem>>, vector<128x128xf32>
    %cst_53 = arith.constant dense<0.000000e+00> : vector<2x128xf32>
    %119 = tpu.matmul %115, %118, %cst_53 {dimension_numbers = #tpu.dot_dimension_numbers<[1], [0], [0], [1], [0, 0, 1, 1], [], []>} : vector<2x128xf32>, vector<128x128xf32>, vector<2x128xf32> -> vector<2x128xf32>
    %120 = vector.broadcast %9 : vector<1x128xf32> to vector<2x128xf32>
    %121 = arith.addf %119, %120 : vector<2x128xf32>
    %122 = vector.shape_cast %121 : vector<2x128xf32> to vector<2x1x128xf32>
    %c0_54 = arith.constant 0 : index
    %c0_55 = arith.constant 0 : index
    %c0_56 = arith.constant 0 : index
    %123 = vector.load %arg8[%c0_54, %c0_55, %c0_56] : memref<2x1x128xf32, #tpu.memory_space<vmem>>, vector<2x1x128xf32>
    tpu.vector_store %arg8[%c0_54, %c0_55, %c0_56], %122 {strides = array<i32>} : memref<2x1x128xf32, #tpu.memory_space<vmem>>, vector<2x1x128xf32>,
    return
  }
  func.func @transform_0(%arg0: i32) -> (i32, i32, i32) {
    %c0_i32 = arith.constant 0 : i32
    %c0_i32_0 = arith.constant 0 : i32
    %c0_i32_1 = arith.constant 0 : i32
    return %arg0, %c0_i32, %c0_i32_0 : i32, i32, i32
  }
  func.func @transform_1(%arg0: i32) -> (i32, i32) {
    %c0_i32 = arith.constant 0 : i32
    %c0_i32_0 = arith.constant 0 : i32
    %c0_i32_1 = arith.constant 0 : i32
    return %c0_i32, %c0_i32_0 : i32, i32
  }
  func.func @transform_2(%arg0: i32) -> (i32, i32) {
    %c0_i32 = arith.constant 0 : i32
    %c0_i32_0 = arith.constant 0 : i32
    %c0_i32_1 = arith.constant 0 : i32
    return %c0_i32, %c0_i32_0 : i32, i32
  }
  func.func @transform_3(%arg0: i32) -> (i32, i32) {
    %c0_i32 = arith.constant 0 : i32
    %c0_i32_0 = arith.constant 0 : i32
    %c0_i32_1 = arith.constant 0 : i32
    return %c0_i32, %c0_i32_0 : i32, i32
  }
  func.func @transform_4(%arg0: i32) -> (i32, i32) {
    %c0_i32 = arith.constant 0 : i32
    %c0_i32_0 = arith.constant 0 : i32
    %c0_i32_1 = arith.constant 0 : i32
    return %c0_i32, %c0_i32_0 : i32, i32
  }
  func.func @transform_5(%arg0: i32) -> (i32, i32, i32) {
    %c0_i32 = arith.constant 0 : i32
    %c0_i32_0 = arith.constant 0 : i32
    %c0_i32_1 = arith.constant 0 : i32
    return %arg0, %c0_i32, %c0_i32_0 : i32, i32, i32
  }
  func.func @transform_6(%arg0: i32) -> (i32, i32, i32) {
    %c0_i32 = arith.constant 0 : i32
    %c0_i32_0 = arith.constant 0 : i32
    %c0_i32_1 = arith.constant 0 : i32
    return %arg0, %c0_i32, %c0_i32_0 : i32, i32, i32
  }
  func.func @transform_7(%arg0: i32) -> (i32, i32, i32) {
    %c0_i32 = arith.constant 0 : i32
    %c0_i32_0 = arith.constant 0 : i32
    %c0_i32_1 = arith.constant 0 : i32
    return %arg0, %c0_i32, %c0_i32_0 : i32, i32, i32
  }
}

</mosaic_0001>

<llo_original>
// kernel: video_transformer_classifier.1
$region0: #{video_transformer_classifier.1}
  #allocation0 [shape = 'u32[]', space=smem, size = 0x4, offset = 0x4, fixed_abs, tag = 'smem constant byte address 0x4 - core index']
  #allocation1 [shape = 'u32[72,128]{1,0:T(1,128)}', space=vmem, size = 0x9000, scoped, tag = 'internal scratch']
  %s0 = inlined_call_operand.vmem [shape: bf16[2,8,1024], index: 0, kind: input, shape index: {}]
  %s1 = inlined_call_operand.vmem [shape: bf16[1024,128], index: 1, kind: input, shape index: {}]
  %s2 = inlined_call_operand.vmem [shape: f32[128,896], index: 2, kind: input, shape index: {}]
  %s3 = inlined_call_operand.vmem [shape: f32[256,128], index: 3, kind: input, shape index: {}]
  %s4 = inlined_call_operand.vmem [shape: f32[10,384], index: 4, kind: input, shape index: {}]
  %s5 = inlined_call_operand.hbm [shape: f32[2,8,128], index: 5, kind: output, shape index: {0}]
  %s6 = inlined_call_operand.hbm [shape: f32[2,1,128], index: 6, kind: output, shape index: {1}]
  %s7 = inlined_call_operand.hbm [shape: f32[2,1,128], index: 7, kind: output, shape index: {2}]
  %8 = xla_tuple %s5, %s6, %s7
  %s9 = sld [smem:[#allocation0]]
  $region46: #{video_transformer_classifier.1} parent=0
    _
  %s11 = ssub.s32 1, %s9
  %s12 = scalar_select 0, %s11, %s9
  $region1: #{video_transformer_classifier.1} parent=0
    #allocation2 [shape = 'u8[8192]{0}', space=vmem, size = 0x2000, scoped, tag = 'output window, operand 0, single buffered']
    #allocation3 [shape = 's32[1]{0}', space=sflag, size = 0x4, scoped, tag = 'scoped memory for video_transformer_classifier.1']
    #allocation4 [shape = 'u8[1024]{0}', space=vmem, size = 0x400, scoped, tag = 'output window, operand 1, single buffered']
    #allocation5 [shape = 's32[1]{0}', space=sflag, size = 0x4, scoped, tag = 'scoped memory for video_transformer_classifier.1']
    #allocation6 [shape = 'u8[1024]{0}', space=vmem, size = 0x400, scoped, tag = 'output window, operand 2, single buffered']
    %13 = vsyncpa [#allocation3], 0
    %14 = vsyncpa [#allocation5], 0
    // Predicated region
    $region2: #{video_transformer_classifier.1} parent=1 // pred_check
      _
    $region3: #{video_transformer_classifier.1} parent=1 // pred_check_branch
      %16 = sbr.rel (0) target = $region5
    $region4: #{video_transformer_classifier.1} parent=1 // pred_region
      _
    $region5: #{video_transformer_classifier.1} parent=1 // pred_fallthru
      _
    // Predicated region
    $region6: #{video_transformer_classifier.1} parent=1 // pred_check
      _
    $region7: #{video_transformer_classifier.1} parent=1 // pred_check_branch
      %18 = sbr.rel (0) target = $region9
    $region8: #{video_transformer_classifier.1} parent=1 // pred_region
      _
    $region9: #{video_transformer_classifier.1} parent=1 // pred_fallthru
      _
    // Predicated region
    $region10: #{video_transformer_classifier.1} parent=1 // pred_check
      _
    $region11: #{video_transformer_classifier.1} parent=1 // pred_check_branch
      %20 = sbr.rel (0) target = $region13
    $region12: #{video_transformer_classifier.1} parent=1 // pred_region
      _
    $region13: #{video_transformer_classifier.1} parent=1 // pred_fallthru
      _
    // Predicated region
    $region14: #{video_transformer_classifier.1} parent=1 // pred_check
      _
    $region15: #{video_transformer_classifier.1} parent=1 // pred_check_branch
      %22 = sbr.rel (0) target = $region17
    $region16: #{video_transformer_classifier.1} parent=1 // pred_region
      _
    $region17: #{video_transformer_classifier.1} parent=1 // pred_fallthru
      _
    // Predicated region
    $region18: #{video_transformer_classifier.1} parent=1 // pred_check
      _
    $region19: #{video_transformer_classifier.1} parent=1 // pred_check_branch
      %24 = sbr.rel (0) target = $region21
    $region20: #{video_transformer_classifier.1} parent=1 // pred_region
      _
    $region21: #{video_transformer_classifier.1} parent=1 // pred_fallthru
      _
    %v25 = vld [vmem:[%s4] ss:$0 sm:$0xff]
    %v26 = vld [vmem:[%s4 + $0x1] ss:$0 sm:$0xff]
    %v27 = vld [vmem:[%s4 + $0x2] ss:$0 sm:$0xff]
    %s28 = scalar_lea.vmem %s4, 3
    %v29 = vld [vmem:[%s28] ss:$8 sm:$0x7]
    %v30 = vld [vmem:[%s4 + $0x4] ss:$0 sm:$0xff]
    %v31 = vld [vmem:[%s4 + $0x5] ss:$0 sm:$0xff]
    %v32 = vld [vmem:[%s4 + $0x6] ss:$0 sm:$0xff]
    %s33 = scalar_lea.vmem %s4, 7
    %v34 = vld [vmem:[%s33] ss:$8 sm:$0x3]
    %v35 = vld [vmem:[%s4 + $0x18] ss:$0 sm:$0xff]
    %v36 = vld [vmem:[%s4 + $0x19] ss:$0 sm:$0xff]
    %v37 = vld [vmem:[%s0] sm:$0xff]
    %v38 = vld [vmem:[%s0 + $0x8] sm:$0xff]
    %v39 = vld [vmem:[%s0 + $0x10] sm:$0xff]
    %v40 = vld [vmem:[%s0 + $0x18] sm:$0xff]
    %v41 = vld [vmem:[%s0 + $0x20] sm:$0xff]
    %v42 = vld [vmem:[%s0 + $0x28] sm:$0xff]
    %v43 = vld [vmem:[%s0 + $0x30] sm:$0xff]
    %v44 = vld [vmem:[%s0 + $0x38] sm:$0xff]
    %v45 = vld [vmem:[%s1] sm:$0xf]
    %v46 = vld [vmem:[%s1 + $0x4] sm:$0xf]
    %v47 = vld [vmem:[%s1 + $0x8] sm:$0xf]
    %v48 = vld [vmem:[%s1 + $0xc] sm:$0xf]
    %v49 = vld [vmem:[%s1 + $0x10] sm:$0xf]
    %v50 = vld [vmem:[%s1 + $0x14] sm:$0xf]
    %v51 = vld [vmem:[%s1 + $0x18] sm:$0xf]
    %v52 = vld [vmem:[%s1 + $0x1c] sm:$0xf]
    %v53 = vld [vmem:[%s1 + $0x20] sm:$0xf]
    %v54 = vld [vmem:[%s1 + $0x24] sm:$0xf]
    %v55 = vld [vmem:[%s1 + $0x28] sm:$0xf]
    %v56 = vld [vmem:[%s1 + $0x2c] sm:$0xf]
    %v57 = vld [vmem:[%s1 + $0x30] sm:$0xf]
    %v58 = vld [vmem:[%s1 + $0x34] sm:$0xf]
    %v59 = vld [vmem:[%s1 + $0x38] sm:$0xf]
    %v60 = vld [vmem:[%s1 + $0x3c] sm:$0xf]
    %v61 = vld [vmem:[%s1 + $0x40] sm:$0xf]
    %v62 = vld [vmem:[%s1 + $0x44] sm:$0xf]
    %v63 = vld [vmem:[%s1 + $0x48] sm:$0xf]
    %v64 = vld [vmem:[%s1 + $0x4c] sm:$0xf]
    %v65 = vld [vmem:[%s1 + $0x50] sm:$0xf]
    %v66 = vld [vmem:[%s1 + $0x54] sm:$0xf]
    %v67 = vld [vmem:[%s1 + $0x58] sm:$0xf]
    %v68 = vld [vmem:[%s1 + $0x5c] sm:$0xf]
    %v69 = vld [vmem:[%s1 + $0x60] sm:$0xf]
    %v70 = vld [vmem:[%s1 + $0x64] sm:$0xf]
    %v71 = vld [vmem:[%s1 + $0x68] sm:$0xf]
    %v72 = vld [vmem:[%s1 + $0x6c] sm:$0xf]
    %v73 = vld [vmem:[%s1 + $0x70] sm:$0xf]
    %v74 = vld [vmem:[%s1 + $0x74] sm:$0xf]
    %v75 = vld [vmem:[%s1 + $0x78] sm:$0xf]
    %v76 = vld [vmem:[%s1 + $0x7c] sm:$0xf]
    %v77 = vld [vmem:[%s1 + $0x80] sm:$0xf]
    %v78 = vld [vmem:[%s1 + $0x84] sm:$0xf]
    %v79 = vld [vmem:[%s1 + $0x88] sm:$0xf]
    %v80 = vld [vmem:[%s1 + $0x8c] sm:$0xf]
    %v81 = vld [vmem:[%s1 + $0x90] sm:$0xf]
    %v82 = vld [vmem:[%s1 + $0x94] sm:$0xf]
    %v83 = vld [vmem:[%s1 + $0x98] sm:$0xf]
    %v84 = vld [vmem:[%s1 + $0x9c] sm:$0xf]
    %v85 = vld [vmem:[%s1 + $0xa0] sm:$0xf]
    %v86 = vld [vmem:[%s1 + $0xa4] sm:$0xf]
    %v87 = vld [vmem:[%s1 + $0xa8] sm:$0xf]
    %v88 = vld [vmem:[%s1 + $0xac] sm:$0xf]
    %v89 = vld [vmem:[%s1 + $0xb0] sm:$0xf]
    %v90 = vld [vmem:[%s1 + $0xb4] sm:$0xf]
    %v91 = vld [vmem:[%s1 + $0xb8] sm:$0xf]
    %v92 = vld [vmem:[%s1 + $0xbc] sm:$0xf]
    %v93 = vld [vmem:[%s1 + $0xc0] sm:$0xf]
    %v94 = vld [vmem:[%s1 + $0xc4] sm:$0xf]
    %v95 = vld [vmem:[%s1 + $0xc8] sm:$0xf]
    %v96 = vld [vmem:[%s1 + $0xcc] sm:$0xf]
    %v97 = vld [vmem:[%s1 + $0xd0] sm:$0xf]
    %v98 = vld [vmem:[%s1 + $0xd4] sm:$0xf]
    %v99 = vld [vmem:[%s1 + $0xd8] sm:$0xf]
    %v100 = vld [vmem:[%s1 + $0xdc] sm:$0xf]
    %v101 = vld [vmem:[%s1 + $0xe0] sm:$0xf]
    %v102 = vld [vmem:[%s1 + $0xe4] sm:$0xf]
    %v103 = vld [vmem:[%s1 + $0xe8] sm:$0xf]
    %v104 = vld [vmem:[%s1 + $0xec] sm:$0xf]
    %v105 = vld [vmem:[%s1 + $0xf0] sm:$0xf]
    %v106 = vld [vmem:[%s1 + $0xf4] sm:$0xf]
    %v107 = vld [vmem:[%s1 + $0xf8] sm:$0xf]
    %v108 = vld [vmem:[%s1 + $0xfc] sm:$0xf]
    %v109 = vld [vmem:[%s1 + $0x100] sm:$0xf]
    %v110 = vld [vmem:[%s1 + $0x104] sm:$0xf]
    %v111 = vld [vmem:[%s1 + $0x108] sm:$0xf]
    %v112 = vld [vmem:[%s1 + $0x10c] sm:$0xf]
    %v113 = vld [vmem:[%s1 + $0x110] sm:$0xf]
    %v114 = vld [vmem:[%s1 + $0x114] sm:$0xf]
    %v115 = vld [vmem:[%s1 + $0x118] sm:$0xf]
    %v116 = vld [vmem:[%s1 + $0x11c] sm:$0xf]
    %v117 = vld [vmem:[%s1 + $0x120] sm:$0xf]
    %v118 = vld [vmem:[%s1 + $0x124] sm:$0xf]
    %v119 = vld [vmem:[%s1 + $0x128] sm:$0xf]
    %v120 = vld [vmem:[%s1 + $0x12c] sm:$0xf]
    %v121 = vld [vmem:[%s1 + $0x130] sm:$0xf]
    %v122 = vld [vmem:[%s1 + $0x134] sm:$0xf]
    %v123 = vld [vmem:[%s1 + $0x138] sm:$0xf]
    %v124 = vld [vmem:[%s1 + $0x13c] sm:$0xf]
    %v125 = vld [vmem:[%s1 + $0x140] sm:$0xf]
    %v126 = vld [vmem:[%s1 + $0x144] sm:$0xf]
    %v127 = vld [vmem:[%s1 + $0x148] sm:$0xf]
    %v128 = vld [vmem:[%s1 + $0x14c] sm:$0xf]
    %v129 = vld [vmem:[%s1 + $0x150] sm:$0xf]
    %v130 = vld [vmem:[%s1 + $0x154] sm:$0xf]
    %v131 = vld [vmem:[%s1 + $0x158] sm:$0xf]
    %v132 = vld [vmem:[%s1 + $0x15c] sm:$0xf]
    %v133 = vld [vmem:[%s1 + $0x160] sm:$0xf]
    %v134 = vld [vmem:[%s1 + $0x164] sm:$0xf]
    %v135 = vld [vmem:[%s1 + $0x168] sm:$0xf]
    %v136 = vld [vmem:[%s1 + $0x16c] sm:$0xf]
    %v137 = vld [vmem:[%s1 + $0x170] sm:$0xf]
    %v138 = vld [vmem:[%s1 + $0x174] sm:$0xf]
    %v139 = vld [vmem:[%s1 + $0x178] sm:$0xf]
    %v140 = vld [vmem:[%s1 + $0x17c] sm:$0xf]
    %v141 = vld [vmem:[%s1 + $0x180] sm:$0xf]
    %v142 = vld [vmem:[%s1 + $0x184] sm:$0xf]
    %v143 = vld [vmem:[%s1 + $0x188] sm:$0xf]
    %v144 = vld [vmem:[%s1 + $0x18c] sm:$0xf]
    %v145 = vld [vmem:[%s1 + $0x190] sm:$0xf]
    %v146 = vld [vmem:[%s1 + $0x194] sm:$0xf]
    %v147 = vld [vmem:[%s1 + $0x198] sm:$0xf]
    %v148 = vld [vmem:[%s1 + $0x19c] sm:$0xf]
    %v149 = vld [vmem:[%s1 + $0x1a0] sm:$0xf]
    %v150 = vld [vmem:[%s1 + $0x1a4] sm:$0xf]
    %v151 = vld [vmem:[%s1 + $0x1a8] sm:$0xf]
    %v152 = vld [vmem:[%s1 + $0x1ac] sm:$0xf]
    %v153 = vld [vmem:[%s1 + $0x1b0] sm:$0xf]
    %v154 = vld [vmem:[%s1 + $0x1b4] sm:$0xf]
    %v155 = vld [vmem:[%s1 + $0x1b8] sm:$0xf]
    %v156 = vld [vmem:[%s1 + $0x1bc] sm:$0xf]
    %v157 = vld [vmem:[%s1 + $0x1c0] sm:$0xf]
    %v158 = vld [vmem:[%s1 + $0x1c4] sm:$0xf]
    %v159 = vld [vmem:[%s1 + $0x1c8] sm:$0xf]
    %v160 = vld [vmem:[%s1 + $0x1cc] sm:$0xf]
    %v161 = vld [vmem:[%s1 + $0x1d0] sm:$0xf]
    %v162 = vld [vmem:[%s1 + $0x1d4] sm:$0xf]
    %v163 = vld [vmem:[%s1 + $0x1d8] sm:$0xf]
    %v164 = vld [vmem:[%s1 + $0x1dc] sm:$0xf]
    %v165 = vld [vmem:[%s1 + $0x1e0] sm:$0xf]
    %v166 = vld [vmem:[%s1 + $0x1e4] sm:$0xf]
    %v167 = vld [vmem:[%s1 + $0x1e8] sm:$0xf]
    %v168 = vld [vmem:[%s1 + $0x1ec] sm:$0xf]
    %v169 = vld [vmem:[%s1 + $0x1f0] sm:$0xf]
    %v170 = vld [vmem:[%s1 + $0x1f4] sm:$0xf]
    %v171 = vld [vmem:[%s1 + $0x1f8] sm:$0xf]
    %v172 = vld [vmem:[%s1 + $0x1fc] sm:$0xf]
    %v181 = vunpack.c.l.b16 %v37
    %v182 = vunpack.c.h.b16 %v37
    %v183 = vunpack.c.l.b16 %v38
    %v184 = vunpack.c.h.b16 %v38
    %v185 = vunpack.c.l.b16 %v39
    %v186 = vunpack.c.h.b16 %v39
    %v187 = vunpack.c.l.b16 %v40
    %v188 = vunpack.c.h.b16 %v40
    %v189 = vunpack.c.l.b16 %v41
    %v190 = vunpack.c.h.b16 %v41
    %v191 = vunpack.c.l.b16 %v42
    %v192 = vunpack.c.h.b16 %v42
    %v193 = vunpack.c.l.b16 %v43
    %v194 = vunpack.c.h.b16 %v43
    %v195 = vunpack.c.l.b16 %v44
    %v196 = vunpack.c.h.b16 %v44
    %v197 = vpack.c.b16 %v189, %v181
    %v198 = vpack.c.b16 %v190, %v182
    %v199 = vpack.c.b16 %v191, %v183
    %v200 = vpack.c.b16 %v192, %v184
    %v201 = vpack.c.b16 %v193, %v185
    %v202 = vpack.c.b16 %v194, %v186
    %v203 = vpack.c.b16 %v195, %v187
    %v204 = vpack.c.b16 %v196, %v188
    %v341 = vunpack.c.l.b16 %v45
    %v342 = vunpack.c.l.b16 %v46
    %v343 = vunpack.c.l.b16 %v47
    %v344 = vunpack.c.l.b16 %v48
    %v345 = vunpack.c.l.b16 %v49
    %v346 = vunpack.c.l.b16 %v50
    %v347 = vunpack.c.l.b16 %v51
    %v348 = vunpack.c.l.b16 %v52
    %v349 = vunpack.c.l.b16 %v53
    %v350 = vunpack.c.l.b16 %v54
    %v351 = vunpack.c.l.b16 %v55
    %v352 = vunpack.c.l.b16 %v56
    %v353 = vunpack.c.l.b16 %v57
    %v354 = vunpack.c.l.b16 %v58
    %v355 = vunpack.c.l.b16 %v59
    %v356 = vunpack.c.l.b16 %v60
    %v357 = vunpack.c.l.b16 %v61
    %v358 = vunpack.c.l.b16 %v62
    %v359 = vunpack.c.l.b16 %v63
    %v360 = vunpack.c.l.b16 %v64
    %v361 = vunpack.c.l.b16 %v65
    %v362 = vunpack.c.l.b16 %v66
    %v363 = vunpack.c.l.b16 %v67
    %v364 = vunpack.c.l.b16 %v68
    %v365 = vunpack.c.l.b16 %v69
    %v366 = vunpack.c.l.b16 %v70
    %v367 = vunpack.c.l.b16 %v71
    %v368 = vunpack.c.l.b16 %v72
    %v369 = vunpack.c.l.b16 %v73
    %v370 = vunpack.c.l.b16 %v74
    %v371 = vunpack.c.l.b16 %v75
    %v372 = vunpack.c.l.b16 %v76
    %v373 = vunpack.c.l.b16 %v77
    %v374 = vunpack.c.l.b16 %v78
    %v375 = vunpack.c.l.b16 %v79
    %v376 = vunpack.c.l.b16 %v80
    %v377 = vunpack.c.l.b16 %v81
    %v378 = vunpack.c.l.b16 %v82
    %v379 = vunpack.c.l.b16 %v83
    %v380 = vunpack.c.l.b16 %v84
    %v381 = vunpack.c.l.b16 %v85
    %v382 = vunpack.c.l.b16 %v86
    %v383 = vunpack.c.l.b16 %v87
    %v384 = vunpack.c.l.b16 %v88
    %v385 = vunpack.c.l.b16 %v89
    %v386 = vunpack.c.l.b16 %v90
    %v387 = vunpack.c.l.b16 %v91
    %v388 = vunpack.c.l.b16 %v92
    %v389 = vunpack.c.l.b16 %v93
    %v390 = vunpack.c.l.b16 %v94
    %v391 = vunpack.c.l.b16 %v95
    %v392 = vunpack.c.l.b16 %v96
    %v393 = vunpack.c.l.b16 %v97
    %v394 = vunpack.c.l.b16 %v98
    %v395 = vunpack.c.l.b16 %v99
    %v396 = vunpack.c.l.b16 %v100
    %v397 = vunpack.c.l.b16 %v101
    %v398 = vunpack.c.l.b16 %v102
    %v399 = vunpack.c.l.b16 %v103
    %v400 = vunpack.c.l.b16 %v104
    %v401 = vunpack.c.l.b16 %v105
    %v402 = vunpack.c.l.b16 %v106
    %v403 = vunpack.c.l.b16 %v107
    %v404 = vunpack.c.l.b16 %v108
    %v405 = vunpack.c.l.b16 %v109
    %v406 = vunpack.c.l.b16 %v110
    %v407 = vunpack.c.l.b16 %v111
    %v408 = vunpack.c.l.b16 %v112
    %v409 = vunpack.c.l.b16 %v113
    %v410 = vunpack.c.l.b16 %v114
    %v411 = vunpack.c.l.b16 %v115
    %v412 = vunpack.c.l.b16 %v116
    %v413 = vunpack.c.l.b16 %v117
    %v414 = vunpack.c.l.b16 %v118
    %v415 = vunpack.c.l.b16 %v119
    %v416 = vunpack.c.l.b16 %v120
    %v417 = vunpack.c.l.b16 %v121
    %v418 = vunpack.c.l.b16 %v122
    %v419 = vunpack.c.l.b16 %v123
    %v420 = vunpack.c.l.b16 %v124
    %v421 = vunpack.c.l.b16 %v125
    %v422 = vunpack.c.l.b16 %v126
    %v423 = vunpack.c.l.b16 %v127
    %v424 = vunpack.c.l.b16 %v128
    %v425 = vunpack.c.l.b16 %v129
    %v426 = vunpack.c.l.b16 %v130
    %v427 = vunpack.c.l.b16 %v131
    %v428 = vunpack.c.l.b16 %v132
    %v429 = vunpack.c.l.b16 %v133
    %v430 = vunpack.c.l.b16 %v134
    %v431 = vunpack.c.l.b16 %v135
    %v432 = vunpack.c.l.b16 %v136
    %v433 = vunpack.c.l.b16 %v137
    %v434 = vunpack.c.l.b16 %v138
    %v435 = vunpack.c.l.b16 %v139
    %v436 = vunpack.c.l.b16 %v140
    %v437 = vunpack.c.l.b16 %v141
    %v438 = vunpack.c.l.b16 %v142
    %v439 = vunpack.c.l.b16 %v143
    %v440 = vunpack.c.l.b16 %v144
    %v441 = vunpack.c.l.b16 %v145
    %v442 = vunpack.c.l.b16 %v146
    %v443 = vunpack.c.l.b16 %v147
    %v444 = vunpack.c.l.b16 %v148
    %v445 = vunpack.c.l.b16 %v149
    %v446 = vunpack.c.l.b16 %v150
    %v447 = vunpack.c.l.b16 %v151
    %v448 = vunpack.c.l.b16 %v152
    %v449 = vunpack.c.l.b16 %v153
    %v450 = vunpack.c.l.b16 %v154
    %v451 = vunpack.c.l.b16 %v155
    %v452 = vunpack.c.l.b16 %v156
    %v453 = vunpack.c.l.b16 %v157
    %v454 = vunpack.c.l.b16 %v158
    %v455 = vunpack.c.l.b16 %v159
    %v456 = vunpack.c.l.b16 %v160
    %v457 = vunpack.c.l.b16 %v161
    %v458 = vunpack.c.l.b16 %v162
    %v459 = vunpack.c.l.b16 %v163
    %v460 = vunpack.c.l.b16 %v164
    %v461 = vunpack.c.l.b16 %v165
    %v462 = vunpack.c.l.b16 %v166
    %v463 = vunpack.c.l.b16 %v167
    %v464 = vunpack.c.l.b16 %v168
    %v465 = vunpack.c.l.b16 %v169
    %v466 = vunpack.c.l.b16 %v170
    %v467 = vunpack.c.l.b16 %v171
    %v468 = vunpack.c.l.b16 %v172
    %v469 = vpack.c.b16 %v342, %v341
    %v470 = vpack.c.b16 %v344, %v343
    %v471 = vpack.c.b16 %v346, %v345
    %v472 = vpack.c.b16 %v348, %v347
    %v473 = vpack.c.b16 %v350, %v349
    %v474 = vpack.c.b16 %v352, %v351
    %v475 = vpack.c.b16 %v354, %v353
    %v476 = vpack.c.b16 %v356, %v355
    %v477 = vpack.c.b16 %v358, %v357
    %v478 = vpack.c.b16 %v360, %v359
    %v479 = vpack.c.b16 %v362, %v361
    %v480 = vpack.c.b16 %v364, %v363
    %v481 = vpack.c.b16 %v366, %v365
    %v482 = vpack.c.b16 %v368, %v367
    %v483 = vpack.c.b16 %v370, %v369
    %v484 = vpack.c.b16 %v372, %v371
    %v485 = vpack.c.b16 %v374, %v373
    %v486 = vpack.c.b16 %v376, %v375
    %v487 = vpack.c.b16 %v378, %v377
    %v488 = vpack.c.b16 %v380, %v379
    %v489 = vpack.c.b16 %v382, %v381
    %v490 = vpack.c.b16 %v384, %v383
    %v491 = vpack.c.b16 %v386, %v385
    %v492 = vpack.c.b16 %v388, %v387
    %v493 = vpack.c.b16 %v390, %v389
    %v494 = vpack.c.b16 %v392, %v391
    %v495 = vpack.c.b16 %v394, %v393
    %v496 = vpack.c.b16 %v396, %v395
    %v497 = vpack.c.b16 %v398, %v397
    %v498 = vpack.c.b16 %v400, %v399
    %v499 = vpack.c.b16 %v402, %v401
    %v500 = vpack.c.b16 %v404, %v403
    %v501 = vpack.c.b16 %v406, %v405
    %v502 = vpack.c.b16 %v408, %v407
    %v503 = vpack.c.b16 %v410, %v409
    %v504 = vpack.c.b16 %v412, %v411
    %v505 = vpack.c.b16 %v414, %v413
    %v506 = vpack.c.b16 %v416, %v415
    %v507 = vpack.c.b16 %v418, %v417
    %v508 = vpack.c.b16 %v420, %v419
    %v509 = vpack.c.b16 %v422, %v421
    %v510 = vpack.c.b16 %v424, %v423
    %v511 = vpack.c.b16 %v426, %v425
    %v512 = vpack.c.b16 %v428, %v427
    %v513 = vpack.c.b16 %v430, %v429
    %v514 = vpack.c.b16 %v432, %v431
    %v515 = vpack.c.b16 %v434, %v433
    %v516 = vpack.c.b16 %v436, %v435
    %v517 = vpack.c.b16 %v438, %v437
    %v518 = vpack.c.b16 %v440, %v439
    %v519 = vpack.c.b16 %v442, %v441
    %v520 = vpack.c.b16 %v444, %v443
    %v521 = vpack.c.b16 %v446, %v445
    %v522 = vpack.c.b16 %v448, %v447
    %v523 = vpack.c.b16 %v450, %v449
    %v524 = vpack.c.b16 %v452, %v451
    %v525 = vpack.c.b16 %v454, %v453
    %v526 = vpack.c.b16 %v456, %v455
    %v527 = vpack.c.b16 %v458, %v457
    %v528 = vpack.c.b16 %v460, %v459
    %v529 = vpack.c.b16 %v462, %v461
    %v530 = vpack.c.b16 %v464, %v463
    %v531 = vpack.c.b16 %v466, %v465
    %v532 = vpack.c.b16 %v468, %v467
    %597 = vmatpush.bf16.msra.mxu0 %v476
    %598 = vmatpush.bf16.msra.mxu0 %v475
    %599 = vmatpush.bf16.msra.mxu0 %v474
    %600 = vmatpush.bf16.msra.mxu0 %v473
    %601 = vmatpush.bf16.msra.mxu0 %v472
    %602 = vmatpush.bf16.msra.mxu0 %v471
    %603 = vmatpush.bf16.msra.mxu0 %v470
    %604 = vmatpush.bf16.msra.mxu0 %v469
    %605 = vmatmul.bf16.gmra.mxu0 %v197
    %v606 = vpop.f32.mrf.mxu0
    %v607 = vadd.f32 %v25, %v606
    %v608 = vpop.f32.mrf.mxu0
    %v609 = vadd.f32 %v25, %v608
    %610 = vdwg.mxu0
    %611 = vmatpush.bf16.msra.mxu0 %v484
    %612 = vmatpush.bf16.msra.mxu0 %v483
    %613 = vmatpush.bf16.msra.mxu0 %v482
    %614 = vmatpush.bf16.msra.mxu0 %v481
    %615 = vmatpush.bf16.msra.mxu0 %v480
    %616 = vmatpush.bf16.msra.mxu0 %v479
    %617 = vmatpush.bf16.msra.mxu0 %v478
    %618 = vmatpush.bf16.msra.mxu0 %v477
    %619 = vmatmul.bf16.gmra.mxu0 %v198
    %v620 = vpop.f32.mrf.mxu0
    %v621 = vadd.f32 %v607, %v620
    %v622 = vpop.f32.mrf.mxu0
    %v623 = vadd.f32 %v609, %v622
    %624 = vdwg.mxu0
    %625 = vmatpush.bf16.msra.mxu0 %v492
    %626 = vmatpush.bf16.msra.mxu0 %v491
    %627 = vmatpush.bf16.msra.mxu0 %v490
    %628 = vmatpush.bf16.msra.mxu0 %v489
    %629 = vmatpush.bf16.msra.mxu0 %v488
    %630 = vmatpush.bf16.msra.mxu0 %v487
    %631 = vmatpush.bf16.msra.mxu0 %v486
    %632 = vmatpush.bf16.msra.mxu0 %v485
    %633 = vmatmul.bf16.gmra.mxu0 %v199
    %v634 = vpop.f32.mrf.mxu0
    %v635 = vadd.f32 %v621, %v634
    %v636 = vpop.f32.mrf.mxu0
    %v637 = vadd.f32 %v623, %v636
    %638 = vdwg.mxu0
    %639 = vmatpush.bf16.msra.mxu0 %v500
    %640 = vmatpush.bf16.msra.mxu0 %v499
    %641 = vmatpush.bf16.msra.mxu0 %v498
    %642 = vmatpush.bf16.msra.mxu0 %v497
    %643 = vmatpush.bf16.msra.mxu0 %v496
    %644 = vmatpush.bf16.msra.mxu0 %v495
    %645 = vmatpush.bf16.msra.mxu0 %v494
    %646 = vmatpush.bf16.msra.mxu0 %v493
    %647 = vmatmul.bf16.gmra.mxu0 %v200
    %v648 = vpop.f32.mrf.mxu0
    %v649 = vadd.f32 %v635, %v648
    %v650 = vpop.f32.mrf.mxu0
    %v651 = vadd.f32 %v637, %v650
    %652 = vdwg.mxu0
    %653 = vmatpush.bf16.msra.mxu0 %v508
    %654 = vmatpush.bf16.msra.mxu0 %v507
    %655 = vmatpush.bf16.msra.mxu0 %v506
    %656 = vmatpush.bf16.msra.mxu0 %v505
    %657 = vmatpush.bf16.msra.mxu0 %v504
    %658 = vmatpush.bf16.msra.mxu0 %v503
    %659 = vmatpush.bf16.msra.mxu0 %v502
    %660 = vmatpush.bf16.msra.mxu0 %v501
    %661 = vmatmul.bf16.gmra.mxu0 %v201
    %v662 = vpop.f32.mrf.mxu0
    %v663 = vadd.f32 %v649, %v662
    %v664 = vpop.f32.mrf.mxu0
    %v665 = vadd.f32 %v651, %v664
    %666 = vdwg.mxu0
    %667 = vmatpush.bf16.msra.mxu0 %v516
    %668 = vmatpush.bf16.msra.mxu0 %v515
    %669 = vmatpush.bf16.msra.mxu0 %v514
    %670 = vmatpush.bf16.msra.mxu0 %v513
    %671 = vmatpush.bf16.msra.mxu0 %v512
    %672 = vmatpush.bf16.msra.mxu0 %v511
    %673 = vmatpush.bf16.msra.mxu0 %v510
    %674 = vmatpush.bf16.msra.mxu0 %v509
    %675 = vmatmul.bf16.gmra.mxu0 %v202
    %v676 = vpop.f32.mrf.mxu0
    %v677 = vadd.f32 %v663, %v676
    %v678 = vpop.f32.mrf.mxu0
    %v679 = vadd.f32 %v665, %v678
    %680 = vdwg.mxu0
    %681 = vmatpush.bf16.msra.mxu0 %v524
    %682 = vmatpush.bf16.msra.mxu0 %v523
    %683 = vmatpush.bf16.msra.mxu0 %v522
    %684 = vmatpush.bf16.msra.mxu0 %v521
    %685 = vmatpush.bf16.msra.mxu0 %v520
    %686 = vmatpush.bf16.msra.mxu0 %v519
    %687 = vmatpush.bf16.msra.mxu0 %v518
    %688 = vmatpush.bf16.msra.mxu0 %v517
    %689 = vmatmul.bf16.gmra.mxu0 %v203
    %v690 = vpop.f32.mrf.mxu0
    %v691 = vadd.f32 %v677, %v690
    %v692 = vpop.f32.mrf.mxu0
    %v693 = vadd.f32 %v679, %v692
    %694 = vdwg.mxu0
    %695 = vmatpush.bf16.msra.mxu0 %v532
    %696 = vmatpush.bf16.msra.mxu0 %v531
    %697 = vmatpush.bf16.msra.mxu0 %v530
    %698 = vmatpush.bf16.msra.mxu0 %v529
    %699 = vmatpush.bf16.msra.mxu0 %v528
    %700 = vmatpush.bf16.msra.mxu0 %v527
    %701 = vmatpush.bf16.msra.mxu0 %v526
    %702 = vmatpush.bf16.msra.mxu0 %v525
    %703 = vmatmul.bf16.gmra.mxu0 %v204
    %v704 = vpop.f32.mrf.mxu0
    %v705 = vadd.f32 %v691, %v704
    %v706 = vpop.f32.mrf.mxu0
    %v707 = vadd.f32 %v693, %v706
    %708 = vdwg.mxu0
    %709 = vadd.xlane.f32.xlu0 %v705
    %v710 = vpop.xlane.xlu0 %709
    %711 = vadd.xlane.f32.xlu0 %v707
    %v712 = vpop.xlane.xlu0 %711
    %v713 = vrcp.pop 128.0
    %v714 = vmul.f32 128.0, %v713
    %v715 = vsub.f32 1.0, %v714
    %v716 = vmul.f32 %v713, %v715
    %v717 = vadd.f32 %v713, %v716
    %vm718 = vweird.f32 %v713
    %v719 = vsel %vm718, %v713, %v717
    %v720 = vmul.f32 %v710, %v719
    %v721 = vmul.f32 %v712, %v719
    %v722 = vsub.f32 %v705, %v720
    %v723 = vsub.f32 %v707, %v721
    %v724 = vmul.f32 %v722, %v722
    %v725 = vmul.f32 %v723, %v723
    %726 = vadd.xlane.f32.xlu0 %v724
    %v727 = vpop.xlane.xlu0 %726
    %728 = vadd.xlane.f32.xlu0 %v725
    %v729 = vpop.xlane.xlu0 %728
    %v730 = vmul.f32 %v727, %v719
    %v731 = vmul.f32 %v729, %v719
    %v732 = vadd.f32 %v730, 1e-05
    %v733 = vadd.f32 %v731, 1e-05
    %v734 = vrsqrt.pop %v732
    %v735 = vmul.f32 %v734, %v732
    %v736 = vmul.f32 %v735, %v734
    %v737 = vmul.f32 0.5, %v736
    %v738 = vsub.f32 1.5, %v737
    %v739 = vmul.f32 %v734, %v738
    %vm740 = vweird.f32 %v732
    %vm741 = vweird.f32 %v734
    %vm742 = vmor %vm740, %vm741
    %v743 = vsel %vm742, %v734, %v739
    %v744 = vrsqrt.pop %v733
    %v745 = vmul.f32 %v744, %v733
    %v746 = vmul.f32 %v745, %v744
    %v747 = vmul.f32 0.5, %v746
    %v748 = vsub.f32 1.5, %v747
    %v749 = vmul.f32 %v744, %v748
    %vm750 = vweird.f32 %v733
    %vm751 = vweird.f32 %v744
    %vm752 = vmor %vm750, %vm751
    %v753 = vsel %vm752, %v744, %v749
    %v754 = vmul.f32 %v722, %v743
    %v755 = vmul.f32 %v723, %v753
    %v756 = vmul.f32 %v754, %v26
    %v757 = vmul.f32 %v755, %v26
    %v758 = vadd.f32 %v756, %v27
    %v759 = vadd.f32 %v757, %v27
    %v760 = vld [vmem:[%s2] sm:$0xff]
    %v761 = vld [vmem:[%s2 + $0x8] sm:$0xff]
    %v762 = vld [vmem:[%s2 + $0x10] sm:$0xff]
    %v763 = vld [vmem:[%s2 + $0x38] sm:$0xff]
    %v764 = vld [vmem:[%s2 + $0x40] sm:$0xff]
    %v765 = vld [vmem:[%s2 + $0x48] sm:$0xff]
    %v766 = vld [vmem:[%s2 + $0x70] sm:$0xff]
    %v767 = vld [vmem:[%s2 + $0x78] sm:$0xff]
    %v768 = vld [vmem:[%s2 + $0x80] sm:$0xff]
    %v769 = vld [vmem:[%s2 + $0xa8] sm:$0xff]
    %v770 = vld [vmem:[%s2 + $0xb0] sm:$0xff]
    %v771 = vld [vmem:[%s2 + $0xb8] sm:$0xff]
    %v772 = vld [vmem:[%s2 + $0xe0] sm:$0xff]
    %v773 = vld [vmem:[%s2 + $0xe8] sm:$0xff]
    %v774 = vld [vmem:[%s2 + $0xf0] sm:$0xff]
    %v775 = vld [vmem:[%s2 + $0x118] sm:$0xff]
    %v776 = vld [vmem:[%s2 + $0x120] sm:$0xff]
    %v777 = vld [vmem:[%s2 + $0x128] sm:$0xff]
    %v778 = vld [vmem:[%s2 + $0x150] sm:$0xff]
    %v779 = vld [vmem:[%s2 + $0x158] sm:$0xff]
    %v780 = vld [vmem:[%s2 + $0x160] sm:$0xff]
    %v781 = vld [vmem:[%s2 + $0x188] sm:$0xff]
    %v782 = vld [vmem:[%s2 + $0x190] sm:$0xff]
    %v783 = vld [vmem:[%s2 + $0x198] sm:$0xff]
    %v784 = vld [vmem:[%s2 + $0x1c0] sm:$0xff]
    %v785 = vld [vmem:[%s2 + $0x1c8] sm:$0xff]
    %v786 = vld [vmem:[%s2 + $0x1d0] sm:$0xff]
    %v787 = vld [vmem:[%s2 + $0x1f8] sm:$0xff]
    %v788 = vld [vmem:[%s2 + $0x200] sm:$0xff]
    %v789 = vld [vmem:[%s2 + $0x208] sm:$0xff]
    %v790 = vld [vmem:[%s2 + $0x230] sm:$0xff]
    %v791 = vld [vmem:[%s2 + $0x238] sm:$0xff]
    %v792 = vld [vmem:[%s2 + $0x240] sm:$0xff]
    %v793 = vld [vmem:[%s2 + $0x268] sm:$0xff]
    %v794 = vld [vmem:[%s2 + $0x270] sm:$0xff]
    %v795 = vld [vmem:[%s2 + $0x278] sm:$0xff]
    %v796 = vld [vmem:[%s2 + $0x2a0] sm:$0xff]
    %v797 = vld [vmem:[%s2 + $0x2a8] sm:$0xff]
    %v798 = vld [vmem:[%s2 + $0x2b0] sm:$0xff]
    %v799 = vld [vmem:[%s2 + $0x2d8] sm:$0xff]
    %v800 = vld [vmem:[%s2 + $0x2e0] sm:$0xff]
    %v801 = vld [vmem:[%s2 + $0x2e8] sm:$0xff]
    %v802 = vld [vmem:[%s2 + $0x310] sm:$0xff]
    %v803 = vld [vmem:[%s2 + $0x318] sm:$0xff]
    %v804 = vld [vmem:[%s2 + $0x320] sm:$0xff]
    %v805 = vld [vmem:[%s2 + $0x348] sm:$0xff]
    %v806 = vld [vmem:[%s2 + $0x350] sm:$0xff]
    %v807 = vld [vmem:[%s2 + $0x358] sm:$0xff]
    %v809 = vperm.slane %v29, 0
    %v810 = vperm.slane %v29, 1
    %v811 = vperm.slane %v29, 2
    %815 = vmatpush.msra.mxu0 %v805
    %816 = vmatpush.msra.mxu0 %v802
    %817 = vmatpush.msra.mxu0 %v799
    %818 = vmatpush.msra.mxu0 %v796
    %819 = vmatpush.msra.mxu0 %v793
    %820 = vmatpush.msra.mxu0 %v790
    %821 = vmatpush.msra.mxu0 %v787
    %822 = vmatpush.msra.mxu0 %v784
    %823 = vmatpush.msra.mxu0 %v781
    %824 = vmatpush.msra.mxu0 %v778
    %825 = vmatpush.msra.mxu0 %v775
    %826 = vmatpush.msra.mxu0 %v772
    %827 = vmatpush.msra.mxu0 %v769
    %828 = vmatpush.msra.mxu0 %v766
    %829 = vmatpush.msra.mxu0 %v763
    %830 = vmatpush.msra.mxu0 %v760
    %831 = vmatmul.f32.gmra.mxu0 %v758
    %v832 = vpop.f32.mrf.mxu0
    %v833 = vadd.f32 %v809, %v832
    %834 = vmatmul.f32.gmra.mxu0 %v759
    %v835 = vpop.f32.mrf.mxu0
    %v836 = vadd.f32 %v809, %v835
    %837 = vdwg.mxu0
    %838 = vmatpush.msra.mxu0 %v806
    %839 = vmatpush.msra.mxu0 %v803
    %840 = vmatpush.msra.mxu0 %v800
    %841 = vmatpush.msra.mxu0 %v797
    %842 = vmatpush.msra.mxu0 %v794
    %843 = vmatpush.msra.mxu0 %v791
    %844 = vmatpush.msra.mxu0 %v788
    %845 = vmatpush.msra.mxu0 %v785
    %846 = vmatpush.msra.mxu0 %v782
    %847 = vmatpush.msra.mxu0 %v779
    %848 = vmatpush.msra.mxu0 %v776
    %849 = vmatpush.msra.mxu0 %v773
    %850 = vmatpush.msra.mxu0 %v770
    %851 = vmatpush.msra.mxu0 %v767
    %852 = vmatpush.msra.mxu0 %v764
    %853 = vmatpush.msra.mxu0 %v761
    %854 = vmatmul.f32.gmra.mxu0 %v758
    %v855 = vpop.f32.mrf.mxu0
    %v856 = vadd.f32 %v810, %v855
    %857 = vmatmul.f32.gmra.mxu0 %v759
    %v858 = vpop.f32.mrf.mxu0
    %v859 = vadd.f32 %v810, %v858
    %860 = vdwg.mxu0
    %861 = vmatpush.msra.mxu0 %v807
    %862 = vmatpush.msra.mxu0 %v804
    %863 = vmatpush.msra.mxu0 %v801
    %864 = vmatpush.msra.mxu0 %v798
    %865 = vmatpush.msra.mxu0 %v795
    %866 = vmatpush.msra.mxu0 %v792
    %867 = vmatpush.msra.mxu0 %v789
    %868 = vmatpush.msra.mxu0 %v786
    %869 = vmatpush.msra.mxu0 %v783
    %870 = vmatpush.msra.mxu0 %v780
    %871 = vmatpush.msra.mxu0 %v777
    %872 = vmatpush.msra.mxu0 %v774
    %873 = vmatpush.msra.mxu0 %v771
    %874 = vmatpush.msra.mxu0 %v768
    %875 = vmatpush.msra.mxu0 %v765
    %876 = vmatpush.msra.mxu0 %v762
    %877 = vmatmul.f32.gmra.mxu0 %v758
    %v878 = vpop.f32.mrf.mxu0
    %v879 = vadd.f32 %v811, %v878
    %880 = vmatmul.f32.gmra.mxu0 %v759
    %v881 = vpop.f32.mrf.mxu0
    %v882 = vadd.f32 %v811, %v881
    %883 = vdwg.mxu0
    %884 = vmatpush.xpose.msra.mxu0 0.0
    %885 = vmatpush.xpose.msra.mxu0 0.0
    %886 = vmatpush.xpose.msra.mxu0 0.0
    %887 = vmatpush.xpose.msra.mxu0 0.0
    %888 = vmatpush.xpose.msra.mxu0 0.0
    %889 = vmatpush.xpose.msra.mxu0 0.0
    %890 = vmatpush.xpose.msra.mxu0 0.0
    %891 = vmatpush.xpose.msra.mxu0 0.0
    %892 = vmatpush.xpose.msra.mxu0 0.0
    %893 = vmatpush.xpose.msra.mxu0 0.0
    %894 = vmatpush.xpose.msra.mxu0 0.0
    %895 = vmatpush.xpose.msra.mxu0 0.0
    %896 = vmatpush.xpose.msra.mxu0 0.0
    %897 = vmatpush.xpose.msra.mxu0 0.0
    %898 = vmatpush.xpose.msra.mxu0 0.0
    %899 = vmatpush.xpose.msra.mxu0 %v856
    %900 = vmatmul.f32.gmra.mxu0 %v833
    %v901 = vpop.f32.mrf.mxu0
    %v902 = vadd.f32 0.0, %v901
    %903 = vdwg.mxu0
    %904 = vmatpush.xpose.msra.mxu0 0.0
    %905 = vmatpush.xpose.msra.mxu0 0.0
    %906 = vmatpush.xpose.msra.mxu0 0.0
    %907 = vmatpush.xpose.msra.mxu0 0.0
    %908 = vmatpush.xpose.msra.mxu0 0.0
    %909 = vmatpush.xpose.msra.mxu0 0.0
    %910 = vmatpush.xpose.msra.mxu0 0.0
    %911 = vmatpush.xpose.msra.mxu0 0.0
    %912 = vmatpush.xpose.msra.mxu0 0.0
    %913 = vmatpush.xpose.msra.mxu0 0.0
    %914 = vmatpush.xpose.msra.mxu0 0.0
    %915 = vmatpush.xpose.msra.mxu0 0.0
    %916 = vmatpush.xpose.msra.mxu0 0.0
    %917 = vmatpush.xpose.msra.mxu0 0.0
    %918 = vmatpush.xpose.msra.mxu0 0.0
    %919 = vmatpush.xpose.msra.mxu0 %v859
    %920 = vmatmul.f32.gmra.mxu0 %v836
    %v921 = vpop.f32.mrf.mxu0
    %v922 = vadd.f32 0.0, %v921
    %923 = vdwg.mxu0
    %v924 = vmul.f32 %v902, 0.088388346
    %v925 = vmul.f32 %v922, 0.088388346
    %vm926 = vcmask 64512
    %v927 = vsel %vm926, %v924, -inf
    %928 = vmax.xlane.f32.xlu0 %v927
    %v929 = vpop.xlane.xlu0 %928
    %v930 = vsel %vm926, %v925, -inf
    %931 = vmax.xlane.f32.xlu0 %v930
    %v932 = vpop.xlane.xlu0 %931
    %v933 = vsub.f32 %v924, %v929
    %v934 = vsub.f32 %v925, %v932
    %v935 = vmul.f32 %v933, 1.442695
    %v936 = vpow.pop %v935
    %v937 = vmul.f32 %v934, 1.442695
    %v938 = vpow.pop %v937
    %v939 = vsel %vm926, %v936, 0.0
    %940 = vadd.xlane.f32.xlu0 %v939
    %v941 = vpop.xlane.xlu0 %940
    %v942 = vsel %vm926, %v938, 0.0
    %943 = vadd.xlane.f32.xlu0 %v942
    %v944 = vpop.xlane.xlu0 %943
    %v945 = vrcp.pop %v941
    %v946 = vmul.f32 %v941, %v945
    %v947 = vsub.f32 1.0, %v946
    %v948 = vmul.f32 %v945, %v947
    %v949 = vadd.f32 %v945, %v948
    %vm950 = vweird.f32 %v941
    %vm951 = vweird.f32 %v945
    %vm952 = vmor %vm950, %vm951
    %v953 = vsel %vm952, %v945, %v949
    %v954 = vand.u32 2147483647, %v941
    %vm955 = vcmp.eq.f32.partialorder %v954, 8.507059e+37
    %v956 = vand.u32 %v941, 2147483648
    %v957 = vor.u32 1.1754944e-38, %v956
    %v958 = vsel %vm955, %v957, %v953
    %v959 = vmul.f32 %v936, %v958
    %v960 = vrcp.pop %v944
    %v961 = vmul.f32 %v944, %v960
    %v962 = vsub.f32 1.0, %v961
    %v963 = vmul.f32 %v960, %v962
    %v964 = vadd.f32 %v960, %v963
    %vm965 = vweird.f32 %v944
    %vm966 = vweird.f32 %v960
    %vm967 = vmor %vm965, %vm966
    %v968 = vsel %vm967, %v960, %v964
    %v969 = vand.u32 2147483647, %v944
    %vm970 = vcmp.eq.f32.partialorder %v969, 8.507059e+37
    %v971 = vand.u32 %v944, 2147483648
    %v972 = vor.u32 1.1754944e-38, %v971
    %v973 = vsel %vm970, %v972, %v968
    %v974 = vmul.f32 %v938, %v973
    %v976 = vsel %vm926, %v959, 0
    %978 = vmatpush.msra.mxu0 0.0
    %979 = vmatpush.msra.mxu0 0.0
    %980 = vmatpush.msra.mxu0 0.0
    %981 = vmatpush.msra.mxu0 0.0
    %982 = vmatpush.msra.mxu0 0.0
    %983 = vmatpush.msra.mxu0 0.0
    %984 = vmatpush.msra.mxu0 0.0
    %985 = vmatpush.msra.mxu0 0.0
    %986 = vmatpush.msra.mxu0 0.0
    %987 = vmatpush.msra.mxu0 0.0
    %988 = vmatpush.msra.mxu0 0.0
    %989 = vmatpush.msra.mxu0 0.0
    %990 = vmatpush.msra.mxu0 0.0
    %991 = vmatpush.msra.mxu0 0.0
    %992 = vmatpush.msra.mxu0 0.0
    %993 = vmatpush.msra.mxu0 %v879
    %994 = vmatmul.f32.gmra.mxu0 %v976
    %v995 = vpop.f32.mrf.mxu0
    %v996 = vadd.f32 0.0, %v995
    %997 = vdwg.mxu0
    %v999 = vsel %vm926, %v974, 0
    %1001 = vmatpush.msra.mxu0 0.0
    %1002 = vmatpush.msra.mxu0 0.0
    %1003 = vmatpush.msra.mxu0 0.0
    %1004 = vmatpush.msra.mxu0 0.0
    %1005 = vmatpush.msra.mxu0 0.0
    %1006 = vmatpush.msra.mxu0 0.0
    %1007 = vmatpush.msra.mxu0 0.0
    %1008 = vmatpush.msra.mxu0 0.0
    %1009 = vmatpush.msra.mxu0 0.0
    %1010 = vmatpush.msra.mxu0 0.0
    %1011 = vmatpush.msra.mxu0 0.0
    %1012 = vmatpush.msra.mxu0 0.0
    %1013 = vmatpush.msra.mxu0 0.0
    %1014 = vmatpush.msra.mxu0 0.0
    %1015 = vmatpush.msra.mxu0 0.0
    %1016 = vmatpush.msra.mxu0 %v882
    %1017 = vmatmul.f32.gmra.mxu0 %v999
    %v1018 = vpop.f32.mrf.mxu0
    %v1019 = vadd.f32 0.0, %v1018
    %1020 = vdwg.mxu0
    %v1021 = vld [vmem:[%s2 + $0x18] sm:$0xff]
    %v1022 = vld [vmem:[%s2 + $0x50] sm:$0xff]
    %v1023 = vld [vmem:[%s2 + $0x88] sm:$0xff]
    %v1024 = vld [vmem:[%s2 + $0xc0] sm:$0xff]
    %v1025 = vld [vmem:[%s2 + $0xf8] sm:$0xff]
    %v1026 = vld [vmem:[%s2 + $0x130] sm:$0xff]
    %v1027 = vld [vmem:[%s2 + $0x168] sm:$0xff]
    %v1028 = vld [vmem:[%s2 + $0x1a0] sm:$0xff]
    %v1029 = vld [vmem:[%s2 + $0x1d8] sm:$0xff]
    %v1030 = vld [vmem:[%s2 + $0x210] sm:$0xff]
    %v1031 = vld [vmem:[%s2 + $0x248] sm:$0xff]
    %v1032 = vld [vmem:[%s2 + $0x280] sm:$0xff]
    %v1033 = vld [vmem:[%s2 + $0x2b8] sm:$0xff]
    %v1034 = vld [vmem:[%s2 + $0x2f0] sm:$0xff]
    %v1035 = vld [vmem:[%s2 + $0x328] sm:$0xff]
    %v1036 = vld [vmem:[%s2 + $0x360] sm:$0xff]
    %1037 = vmatpush.msra.mxu0 %v1036
    %1038 = vmatpush.msra.mxu0 %v1035
    %1039 = vmatpush.msra.mxu0 %v1034
    %1040 = vmatpush.msra.mxu0 %v1033
    %1041 = vmatpush.msra.mxu0 %v1032
    %1042 = vmatpush.msra.mxu0 %v1031
    %1043 = vmatpush.msra.mxu0 %v1030
    %1044 = vmatpush.msra.mxu0 %v1029
    %1045 = vmatpush.msra.mxu0 %v1028
    %1046 = vmatpush.msra.mxu0 %v1027
    %1047 = vmatpush.msra.mxu0 %v1026
    %1048 = vmatpush.msra.mxu0 %v1025
    %1049 = vmatpush.msra.mxu0 %v1024
    %1050 = vmatpush.msra.mxu0 %v1023
    %1051 = vmatpush.msra.mxu0 %v1022
    %1052 = vmatpush.msra.mxu0 %v1021
    %1053 = vmatmul.f32.gmra.mxu0 %v996
    %v1054 = vpop.f32.mrf.mxu0
    %v1055 = vadd.f32 0.0, %v1054
    %1056 = vmatmul.f32.gmra.mxu0 %v1019
    %v1057 = vpop.f32.mrf.mxu0
    %v1058 = vadd.f32 0.0, %v1057
    %1059 = vdwg.mxu0
    %v1060 = vadd.f32 %v705, %v1055
    %v1061 = vadd.f32 %v707, %v1058
    %v1062 = vadd.f32 %v1060, %v30
    %v1063 = vadd.f32 %v1061, %v30
    %1064 = vadd.xlane.f32.xlu0 %v1062
    %v1065 = vpop.xlane.xlu0 %1064
    %1066 = vadd.xlane.f32.xlu0 %v1063
    %v1067 = vpop.xlane.xlu0 %1066
    %v1068 = vmul.f32 %v1065, %v719
    %v1069 = vmul.f32 %v1067, %v719
    %v1070 = vsub.f32 %v1062, %v1068
    %v1071 = vsub.f32 %v1063, %v1069
    %v1072 = vmul.f32 %v1070, %v1070
    %v1073 = vmul.f32 %v1071, %v1071
    %1074 = vadd.xlane.f32.xlu0 %v1072
    %v1075 = vpop.xlane.xlu0 %1074
    %1076 = vadd.xlane.f32.xlu0 %v1073
    %v1077 = vpop.xlane.xlu0 %1076
    %v1078 = vmul.f32 %v1075, %v719
    %v1079 = vmul.f32 %v1077, %v719
    %v1080 = vadd.f32 %v1078, 1e-05
    %v1081 = vadd.f32 %v1079, 1e-05
    %v1082 = vrsqrt.pop %v1080
    %v1083 = vmul.f32 %v1082, %v1080
    %v1084 = vmul.f32 %v1083, %v1082
    %v1085 = vmul.f32 0.5, %v1084
    %v1086 = vsub.f32 1.5, %v1085
    %v1087 = vmul.f32 %v1082, %v1086
    %vm1088 = vweird.f32 %v1080
    %vm1089 = vweird.f32 %v1082
    %vm1090 = vmor %vm1088, %vm1089
    %v1091 = vsel %vm1090, %v1082, %v1087
    %v1092 = vrsqrt.pop %v1081
    %v1093 = vmul.f32 %v1092, %v1081
    %v1094 = vmul.f32 %v1093, %v1092
    %v1095 = vmul.f32 0.5, %v1094
    %v1096 = vsub.f32 1.5, %v1095
    %v1097 = vmul.f32 %v1092, %v1096
    %vm1098 = vweird.f32 %v1081
    %vm1099 = vweird.f32 %v1092
    %vm1100 = vmor %vm1098, %vm1099
    %v1101 = vsel %vm1100, %v1092, %v1097
    %v1102 = vmul.f32 %v1070, %v1091
    %v1103 = vmul.f32 %v1071, %v1101
    %v1104 = vmul.f32 %v1102, %v31
    %v1105 = vmul.f32 %v1103, %v31
    %v1106 = vadd.f32 %v1104, %v32
    %v1107 = vadd.f32 %v1105, %v32
    %v1108 = vld [vmem:[%s2 + $0x20] sm:$0xff]
    %v1109 = vld [vmem:[%s2 + $0x28] sm:$0xff]
    %v1110 = vld [vmem:[%s2 + $0x58] sm:$0xff]
    %v1111 = vld [vmem:[%s2 + $0x60] sm:$0xff]
    %v1112 = vld [vmem:[%s2 + $0x90] sm:$0xff]
    %v1113 = vld [vmem:[%s2 + $0x98] sm:$0xff]
    %v1114 = vld [vmem:[%s2 + $0xc8] sm:$0xff]
    %v1115 = vld [vmem:[%s2 + $0xd0] sm:$0xff]
    %v1116 = vld [vmem:[%s2 + $0x100] sm:$0xff]
    %v1117 = vld [vmem:[%s2 + $0x108] sm:$0xff]
    %v1118 = vld [vmem:[%s2 + $0x138] sm:$0xff]
    %v1119 = vld [vmem:[%s2 + $0x140] sm:$0xff]
    %v1120 = vld [vmem:[%s2 + $0x170] sm:$0xff]
    %v1121 = vld [vmem:[%s2 + $0x178] sm:$0xff]
    %v1122 = vld [vmem:[%s2 + $0x1a8] sm:$0xff]
    %v1123 = vld [vmem:[%s2 + $0x1b0] sm:$0xff]
    %v1124 = vld [vmem:[%s2 + $0x1e0] sm:$0xff]
    %v1125 = vld [vmem:[%s2 + $0x1e8] sm:$0xff]
    %v1126 = vld [vmem:[%s2 + $0x218] sm:$0xff]
    %v1127 = vld [vmem:[%s2 + $0x220] sm:$0xff]
    %v1128 = vld [vmem:[%s2 + $0x250] sm:$0xff]
    %v1129 = vld [vmem:[%s2 + $0x258] sm:$0xff]
    %v1130 = vld [vmem:[%s2 + $0x288] sm:$0xff]
    %v1131 = vld [vmem:[%s2 + $0x290] sm:$0xff]
    %v1132 = vld [vmem:[%s2 + $0x2c0] sm:$0xff]
    %v1133 = vld [vmem:[%s2 + $0x2c8] sm:$0xff]
    %v1134 = vld [vmem:[%s2 + $0x2f8] sm:$0xff]
    %v1135 = vld [vmem:[%s2 + $0x300] sm:$0xff]
    %v1136 = vld [vmem:[%s2 + $0x330] sm:$0xff]
    %v1137 = vld [vmem:[%s2 + $0x338] sm:$0xff]
    %v1138 = vld [vmem:[%s2 + $0x368] sm:$0xff]
    %v1139 = vld [vmem:[%s2 + $0x370] sm:$0xff]
    %v1141 = vperm.slane %v34, 0
    %v1142 = vperm.slane %v34, 1
    %1145 = vmatpush.msra.mxu0 %v1138
    %1146 = vmatpush.msra.mxu0 %v1136
    %1147 = vmatpush.msra.mxu0 %v1134
    %1148 = vmatpush.msra.mxu0 %v1132
    %1149 = vmatpush.msra.mxu0 %v1130
    %1150 = vmatpush.msra.mxu0 %v1128
    %1151 = vmatpush.msra.mxu0 %v1126
    %1152 = vmatpush.msra.mxu0 %v1124
    %1153 = vmatpush.msra.mxu0 %v1122
    %1154 = vmatpush.msra.mxu0 %v1120
    %1155 = vmatpush.msra.mxu0 %v1118
    %1156 = vmatpush.msra.mxu0 %v1116
    %1157 = vmatpush.msra.mxu0 %v1114
    %1158 = vmatpush.msra.mxu0 %v1112
    %1159 = vmatpush.msra.mxu0 %v1110
    %1160 = vmatpush.msra.mxu0 %v1108
    %1161 = vmatmul.f32.gmra.mxu0 %v1106
    %v1162 = vpop.f32.mrf.mxu0
    %v1163 = vadd.f32 %v1141, %v1162
    %1164 = vmatmul.f32.gmra.mxu0 %v1107
    %v1165 = vpop.f32.mrf.mxu0
    %v1166 = vadd.f32 %v1141, %v1165
    %1167 = vdwg.mxu0
    %1168 = vmatpush.msra.mxu0 %v1139
    %1169 = vmatpush.msra.mxu0 %v1137
    %1170 = vmatpush.msra.mxu0 %v1135
    %1171 = vmatpush.msra.mxu0 %v1133
    %1172 = vmatpush.msra.mxu0 %v1131
    %1173 = vmatpush.msra.mxu0 %v1129
    %1174 = vmatpush.msra.mxu0 %v1127
    %1175 = vmatpush.msra.mxu0 %v1125
    %1176 = vmatpush.msra.mxu0 %v1123
    %1177 = vmatpush.msra.mxu0 %v1121
    %1178 = vmatpush.msra.mxu0 %v1119
    %1179 = vmatpush.msra.mxu0 %v1117
    %1180 = vmatpush.msra.mxu0 %v1115
    %1181 = vmatpush.msra.mxu0 %v1113
    %1182 = vmatpush.msra.mxu0 %v1111
    %1183 = vmatpush.msra.mxu0 %v1109
    %1184 = vmatmul.f32.gmra.mxu0 %v1106
    %v1185 = vpop.f32.mrf.mxu0
    %v1186 = vadd.f32 %v1142, %v1185
    %1187 = vmatmul.f32.gmra.mxu0 %v1107
    %v1188 = vpop.f32.mrf.mxu0
    %v1189 = vadd.f32 %v1142, %v1188
    %1190 = vdwg.mxu0
    %v1191 = vmul.f32 %v1163, %v1163
    %v1192 = vmul.f32 %v1186, %v1186
    %v1193 = vmul.f32 %v1166, %v1166
    %v1194 = vmul.f32 %v1189, %v1189
    %v1195 = vmul.f32 %v1163, %v1191
    %v1196 = vmul.f32 %v1186, %v1192
    %v1197 = vmul.f32 %v1166, %v1193
    %v1198 = vmul.f32 %v1189, %v1194
    %v1199 = vmul.f32 %v1195, 0.044715
    %v1200 = vmul.f32 %v1196, 0.044715
    %v1201 = vmul.f32 %v1197, 0.044715
    %v1202 = vmul.f32 %v1198, 0.044715
    %v1203 = vadd.f32 %v1163, %v1199
    %v1204 = vadd.f32 %v1186, %v1200
    %v1205 = vadd.f32 %v1166, %v1201
    %v1206 = vadd.f32 %v1189, %v1202
    %v1207 = vmul.f32 %v1203, 0.7978846
    %v1208 = vmul.f32 %v1204, 0.7978846
    %v1209 = vmul.f32 %v1205, 0.7978846
    %v1210 = vmul.f32 %v1206, 0.7978846
    %v1211 = vtanh.pop %v1207
    %v1212 = vtanh.pop %v1208
    %v1213 = vtanh.pop %v1209
    %v1214 = vtanh.pop %v1210
    %v1215 = vadd.f32 %v1211, 1.0
    %v1216 = vadd.f32 %v1212, 1.0
    %v1217 = vadd.f32 %v1213, 1.0
    %v1218 = vadd.f32 %v1214, 1.0
    %v1219 = vmul.f32 %v1215, 0.5
    %v1220 = vmul.f32 %v1216, 0.5
    %v1221 = vmul.f32 %v1217, 0.5
    %v1222 = vmul.f32 %v1218, 0.5
    %v1223 = vmul.f32 %v1163, %v1219
    %v1224 = vmul.f32 %v1186, %v1220
    %v1225 = vmul.f32 %v1166, %v1221
    %v1226 = vmul.f32 %v1189, %v1222
    %v1227 = vld [vmem:[%s3] sm:$0xff]
    %v1228 = vld [vmem:[%s3 + $0x8] sm:$0xff]
    %v1229 = vld [vmem:[%s3 + $0x10] sm:$0xff]
    %v1230 = vld [vmem:[%s3 + $0x18] sm:$0xff]
    %v1231 = vld [vmem:[%s3 + $0x20] sm:$0xff]
    %v1232 = vld [vmem:[%s3 + $0x28] sm:$0xff]
    %v1233 = vld [vmem:[%s3 + $0x30] sm:$0xff]
    %v1234 = vld [vmem:[%s3 + $0x38] sm:$0xff]
    %v1235 = vld [vmem:[%s3 + $0x40] sm:$0xff]
    %v1236 = vld [vmem:[%s3 + $0x48] sm:$0xff]
    %v1237 = vld [vmem:[%s3 + $0x50] sm:$0xff]
    %v1238 = vld [vmem:[%s3 + $0x58] sm:$0xff]
    %v1239 = vld [vmem:[%s3 + $0x60] sm:$0xff]
    %v1240 = vld [vmem:[%s3 + $0x68] sm:$0xff]
    %v1241 = vld [vmem:[%s3 + $0x70] sm:$0xff]
    %v1242 = vld [vmem:[%s3 + $0x78] sm:$0xff]
    %v1243 = vld [vmem:[%s3 + $0x80] sm:$0xff]
    %v1244 = vld [vmem:[%s3 + $0x88] sm:$0xff]
    %v1245 = vld [vmem:[%s3 + $0x90] sm:$0xff]
    %v1246 = vld [vmem:[%s3 + $0x98] sm:$0xff]
    %v1247 = vld [vmem:[%s3 + $0xa0] sm:$0xff]
    %v1248 = vld [vmem:[%s3 + $0xa8] sm:$0xff]
    %v1249 = vld [vmem:[%s3 + $0xb0] sm:$0xff]
    %v1250 = vld [vmem:[%s3 + $0xb8] sm:$0xff]
    %v1251 = vld [vmem:[%s3 + $0xc0] sm:$0xff]
    %v1252 = vld [vmem:[%s3 + $0xc8] sm:$0xff]
    %v1253 = vld [vmem:[%s3 + $0xd0] sm:$0xff]
    %v1254 = vld [vmem:[%s3 + $0xd8] sm:$0xff]
    %v1255 = vld [vmem:[%s3 + $0xe0] sm:$0xff]
    %v1256 = vld [vmem:[%s3 + $0xe8] sm:$0xff]
    %v1257 = vld [vmem:[%s3 + $0xf0] sm:$0xff]
    %v1258 = vld [vmem:[%s3 + $0xf8] sm:$0xff]
    %1259 = vmatpush.msra.mxu0 %v1242
    %1260 = vmatpush.msra.mxu0 %v1241
    %1261 = vmatpush.msra.mxu0 %v1240
    %1262 = vmatpush.msra.mxu0 %v1239
    %1263 = vmatpush.msra.mxu0 %v1238
    %1264 = vmatpush.msra.mxu0 %v1237
    %1265 = vmatpush.msra.mxu0 %v1236
    %1266 = vmatpush.msra.mxu0 %v1235
    %1267 = vmatpush.msra.mxu0 %v1234
    %1268 = vmatpush.msra.mxu0 %v1233
    %1269 = vmatpush.msra.mxu0 %v1232
    %1270 = vmatpush.msra.mxu0 %v1231
    %1271 = vmatpush.msra.mxu0 %v1230
    %1272 = vmatpush.msra.mxu0 %v1229
    %1273 = vmatpush.msra.mxu0 %v1228
    %1274 = vmatpush.msra.mxu0 %v1227
    %1275 = vmatmul.f32.gmra.mxu0 %v1223
    %v1276 = vpop.f32.mrf.mxu0
    %v1277 = vadd.f32 %v35, %v1276
    %1278 = vmatmul.f32.gmra.mxu0 %v1225
    %v1279 = vpop.f32.mrf.mxu0
    %v1280 = vadd.f32 %v35, %v1279
    %1281 = vdwg.mxu0
    %1282 = vmatpush.msra.mxu0 %v1258
    %1283 = vmatpush.msra.mxu0 %v1257
    %1284 = vmatpush.msra.mxu0 %v1256
    %1285 = vmatpush.msra.mxu0 %v1255
    %1286 = vmatpush.msra.mxu0 %v1254
    %1287 = vmatpush.msra.mxu0 %v1253
    %1288 = vmatpush.msra.mxu0 %v1252
    %1289 = vmatpush.msra.mxu0 %v1251
    %1290 = vmatpush.msra.mxu0 %v1250
    %1291 = vmatpush.msra.mxu0 %v1249
    %1292 = vmatpush.msra.mxu0 %v1248
    %1293 = vmatpush.msra.mxu0 %v1247
    %1294 = vmatpush.msra.mxu0 %v1246
    %1295 = vmatpush.msra.mxu0 %v1245
    %1296 = vmatpush.msra.mxu0 %v1244
    %1297 = vmatpush.msra.mxu0 %v1243
    %1298 = vmatmul.f32.gmra.mxu0 %v1224
    %v1299 = vpop.f32.mrf.mxu0
    %v1300 = vadd.f32 %v1277, %v1299
    %1301 = vmatmul.f32.gmra.mxu0 %v1226
    %v1302 = vpop.f32.mrf.mxu0
    %v1303 = vadd.f32 %v1280, %v1302
    %1304 = vdwg.mxu0
    %v1305 = vadd.f32 %v1062, %v1300
    %v1306 = vadd.f32 %v1063, %v1303
    %1307 = vst [vmem:[#allocation2] sm:$0xff] %v1305
    %1308 = vst [vmem:[#allocation2 + $0x8] sm:$0xff] %v1306
    %v1309 = vrot.slane %v1305, 4
    %v1310 = vadd.f32 %v1305, %v1309
    %v1311 = vrot.slane %v1310, 2
    %v1312 = vadd.f32 %v1310, %v1311
    %v1313 = vrot.slane %v1312, 1
    %v1314 = vadd.f32 %v1312, %v1313
    %v1315 = vrot.slane %v1306, 4
    %v1316 = vadd.f32 %v1306, %v1315
    %v1317 = vrot.slane %v1316, 2
    %v1318 = vadd.f32 %v1316, %v1317
    %v1319 = vrot.slane %v1318, 1
    %v1320 = vadd.f32 %v1318, %v1319
    %v1321 = vrcp.pop 8.0
    %v1322 = vmul.f32 8.0, %v1321
    %v1323 = vsub.f32 1.0, %v1322
    %v1324 = vmul.f32 %v1321, %v1323
    %v1325 = vadd.f32 %v1321, %v1324
    %vm1326 = vweird.f32 %v1321
    %v1327 = vsel %vm1326, %v1321, %v1325
    %v1328 = vmul.f32 %v1314, %v1327
    %v1329 = vmul.f32 %v1320, %v1327
    %1330 = vst [vmem:[#allocation4] sm:$0x1] %v1328
    %1331 = vst [vmem:[#allocation4 + $0x1] sm:$0x1] %v1329
    %v1332 = vld [vmem:[%s2 + $0x30] sm:$0xff]
    %v1333 = vld [vmem:[%s2 + $0x68] sm:$0xff]
    %v1334 = vld [vmem:[%s2 + $0xa0] sm:$0xff]
    %v1335 = vld [vmem:[%s2 + $0xd8] sm:$0xff]
    %v1336 = vld [vmem:[%s2 + $0x110] sm:$0xff]
    %v1337 = vld [vmem:[%s2 + $0x148] sm:$0xff]
    %v1338 = vld [vmem:[%s2 + $0x180] sm:$0xff]
    %v1339 = vld [vmem:[%s2 + $0x1b8] sm:$0xff]
    %v1340 = vld [vmem:[%s2 + $0x1f0] sm:$0xff]
    %v1341 = vld [vmem:[%s2 + $0x228] sm:$0xff]
    %v1342 = vld [vmem:[%s2 + $0x260] sm:$0xff]
    %v1343 = vld [vmem:[%s2 + $0x298] sm:$0xff]
    %v1344 = vld [vmem:[%s2 + $0x2d0] sm:$0xff]
    %v1345 = vld [vmem:[%s2 + $0x308] sm:$0xff]
    %v1346 = vld [vmem:[%s2 + $0x340] sm:$0xff]
    %v1347 = vld [vmem:[%s2 + $0x378] sm:$0xff]
    %vm1350 = vcmask 1041409
    %v1351 = vsel %vm1350, %v1329, %v1328
    %1353 = vmatpush.msra.mxu0 %v1347
    %1354 = vmatpush.msra.mxu0 %v1346
    %1355 = vmatpush.msra.mxu0 %v1345
    %1356 = vmatpush.msra.mxu0 %v1344
    %1357 = vmatpush.msra.mxu0 %v1343
    %1358 = vmatpush.msra.mxu0 %v1342
    %1359 = vmatpush.msra.mxu0 %v1341
    %1360 = vmatpush.msra.mxu0 %v1340
    %1361 = vmatpush.msra.mxu0 %v1339
    %1362 = vmatpush.msra.mxu0 %v1338
    %1363 = vmatpush.msra.mxu0 %v1337
    %1364 = vmatpush.msra.mxu0 %v1336
    %1365 = vmatpush.msra.mxu0 %v1335
    %1366 = vmatpush.msra.mxu0 %v1334
    %1367 = vmatpush.msra.mxu0 %v1333
    %1368 = vmatpush.msra.mxu0 %v1332
    %1369 = vmatmul.f32.gmra.mxu0 %v1351
    %v1370 = vpop.f32.mrf.mxu0
    %v1371 = vadd.f32 %v36, %v1370
    %1372 = vdwg.mxu0
    %v1374 = vrot.slane %v1371, 1
    %1376 = vst [vmem:[#allocation6] sm:$0x1] %v1371
    %1377 = vst [vmem:[#allocation6 + $0x1] sm:$0x1] %v1374
    // Predicated region
    $region22: #{video_transformer_classifier.1} parent=1 // pred_check
      _
    $region23: #{video_transformer_classifier.1} parent=1 // pred_check_branch
      %1379 = sbr.rel (0) target = $region25
    $region24: #{video_transformer_classifier.1} parent=1 // pred_region
      %1381 = vsyncadd [#allocation3], 0
      %s1382 = sshll.u32 [#allocation2], 4
      %s1383 = int_to_ptr.vmem [resolvable:$true] %s1382
      %s1384 = sshll.u32 %s5, 4
      %s1385 = int_to_ptr.hbm [resolvable:$true] %s1384
      %1390 = dma.vmem_to_hbm [thread:$0]  %s1383, 256, %s1385, [#allocation3], 128, 128, 8
    $region25: #{video_transformer_classifier.1} parent=1 // pred_fallthru
      _
    // Predicated region
    $region26: #{video_transformer_classifier.1} parent=1 // pred_check
      _
    $region27: #{video_transformer_classifier.1} parent=1 // pred_check_branch
      %1392 = sbr.rel (0) target = $region29
    $region28: #{video_transformer_classifier.1} parent=1 // pred_region
      %1394 = vsyncadd [#allocation5], 0
      %s1395 = sshll.u32 [#allocation4], 4
      %s1396 = int_to_ptr.vmem [resolvable:$true] %s1395
      %s1397 = sshll.u32 %s6, 4
      %s1398 = int_to_ptr.hbm [resolvable:$true] %s1397
      %1403 = dma.vmem_to_hbm [thread:$0]  %s1396, 32, %s1398, [#allocation5], 16, 16, 1
    $region29: #{video_transformer_classifier.1} parent=1 // pred_fallthru
      _
    // Predicated region
    $region30: #{video_transformer_classifier.1} parent=1 // pred_check
      _
    $region31: #{video_transformer_classifier.1} parent=1 // pred_check_branch
      %1405 = sbr.rel (0) target = $region33
    $region32: #{video_transformer_classifier.1} parent=1 // pred_region
      %1407 = vsyncadd [#allocation5], 0
      %s1408 = sshll.u32 [#allocation6], 4
      %s1409 = int_to_ptr.vmem [resolvable:$true] %s1408
      %s1410 = sshll.u32 %s7, 4
      %s1411 = int_to_ptr.hbm [resolvable:$true] %s1410
      %1416 = dma.vmem_to_hbm [thread:$0]  %s1409, 32, %s1411, [#allocation5], 16, 16, 1
    $region33: #{video_transformer_classifier.1} parent=1 // pred_fallthru
      _
    // Predicated region
    $region34: #{video_transformer_classifier.1} parent=1 // pred_check
      _
    $region35: #{video_transformer_classifier.1} parent=1 // pred_check_branch
      %1418 = sbr.rel (0) target = $region37
    $region36: #{video_transformer_classifier.1} parent=1 // pred_region
      %1420 = dma.done [#allocation3], 256
    $region37: #{video_transformer_classifier.1} parent=1 // pred_fallthru
      _
    // Predicated region
    $region38: #{video_transformer_classifier.1} parent=1 // pred_check
      _
    $region39: #{video_transformer_classifier.1} parent=1 // pred_check_branch
      %1422 = sbr.rel (0) target = $region41
    $region40: #{video_transformer_classifier.1} parent=1 // pred_region
      %1424 = dma.done [#allocation5], 32
    $region41: #{video_transformer_classifier.1} parent=1 // pred_fallthru
      _
    // Predicated region
    $region42: #{video_transformer_classifier.1} parent=1 // pred_check
      _
    $region43: #{video_transformer_classifier.1} parent=1 // pred_check_branch
      %1426 = sbr.rel (0) target = $region45
    $region44: #{video_transformer_classifier.1} parent=1 // pred_region
      %1428 = dma.done [#allocation5], 32
    $region45: #{video_transformer_classifier.1} parent=1 // pred_fallthru
      _
    %1429 = vsyncpa [#allocation3], 1
    %1430 = vsyncpa [#allocation5], 1

</llo_original>
